<compile_context>
chip_gen: v7x
topology: tpu7x:2x2x1
jax: 0.10.0
libtpu: 0.0.40
codegen_flags: <defaults>
</compile_context>

<pallas_src>
import functools

import jax
import jax.numpy as jnp
import numpy as np
from jax.experimental import pallas as pl
from jax.experimental.pallas import tpu as pltpu


def _round_up(x, m):
    return (x + m - 1) // m * m


def _pick_chunk(seq_len, max_chunk):
    """Largest divisor of seq_len that is <= max_chunk (keeps the grid exact)."""
    c = max(1, min(max_chunk, seq_len))
    while seq_len % c:
        c -= 1
    return c


def make_lstm_kernel(num_layers, hidden, t_chunk, compute_dtype):
    """Kernel body: T_CHUNK steps of a stacked-LSTM recurrence per grid step."""
    H, L = hidden, num_layers

    def kernel(*refs):
        # inputs: x_proj, h0, c0, w_hh_0, then (w_ih_l, w_hh_l, b_l) for l >= 1
        n_in = 3 + 1 + 3 * (L - 1)
        xp_ref, h0_ref, c0_ref = refs[0], refs[1], refs[2]
        w_refs = refs[3:n_in]
        hseq_ref, h_out_ref, c_out_ref, h_sc, c_sc = refs[n_in:]

        chunk = pl.program_id(0)

        @pl.when(chunk == 0)
        def _():
            h_sc[...] = h0_ref[...]
            c_sc[...] = c0_ref[...]

        # T_CHUNK recurrence steps per grid iteration.  The loop is unrolled at
        # trace time; every iteration genuinely depends on the previous one, so
        # the carried state (h_sc / c_sc VMEM scratch) is the whole live set.
        for s in range(t_chunk):
            x = None
            for l in range(L):
                h_prev = h_sc[l]                     # (B, H) f32
                c_prev = c_sc[l]                     # (B, H) f32
                if l == 0:
                    # Layer-0 input projection + biases were hoisted outside.
                    gates = xp_ref[s] + jnp.dot(
                        h_prev.astype(compute_dtype), w_refs[0][...],
                        preferred_element_type=jnp.float32)
                else:
                    w_ih = w_refs[1 + 3 * (l - 1)]
                    w_hh = w_refs[2 + 3 * (l - 1)]
                    b = w_refs[3 + 3 * (l - 1)]
                    gates = (
                        jnp.dot(x.astype(compute_dtype), w_ih[...],
                                preferred_element_type=jnp.float32)
                        + jnp.dot(h_prev.astype(compute_dtype), w_hh[...],
                                  preferred_element_type=jnp.float32)
                        + b[...])                    # (B, 4H) f32

                # PyTorch gate order: i, f, g, o.  One sigmoid pass over the
                # full (B, 4H) slab; tanh only on the H-wide g slice (instead
                # of a second full-slab pass) -> minimal EUP work per step.
                sig = jax.nn.sigmoid(gates)          # (B, 4H)
                i_g = sig[:, 0 * H:1 * H]
                f_g = sig[:, 1 * H:2 * H]
                o_g = sig[:, 3 * H:4 * H]
                g_g = jnp.tanh(gates[:, 2 * H:3 * H])

                c_new = f_g * c_prev + i_g * g_g
                h_new = o_g * jnp.tanh(c_new)
                h_sc[l] = h_new
                c_sc[l] = c_new
                x = h_new                            # feed next layer

            # Top-layer hidden state for this step; stored in compute_dtype
            # (it is only consumed by the hoisted decoder matmul).
            hseq_ref[s] = x.astype(hseq_ref.dtype)

        @pl.when(chunk == pl.num_programs(0) - 1)
        def _():
            h_out_ref[...] = h_sc[...]
            c_out_ref[...] = c_sc[...]

    return kernel


def prepare_params(raw, *, hidden_size, num_layers, compute_dtype=jnp.bfloat16):
    """One-time prep: transpose weights, combine biases, cast MXU operands."""
    H, L = hidden_size, num_layers
    p = {"embedding": raw["embedding"].astype(jnp.float32)}
    p["w_ih0_t"] = raw["w_ih_l0"].T.astype(compute_dtype)              # (E, 4H)
    p["b0"] = (raw["b_ih_l0"] + raw["b_hh_l0"]).reshape(1, 4 * H).astype(jnp.float32)
    for l in range(L):
        p[f"w_hh_t_l{l}"] = raw[f"w_hh_l{l}"].T.astype(compute_dtype)  # (H, 4H)
        if l > 0:
            p[f"w_ih_t_l{l}"] = raw[f"w_ih_l{l}"].T.astype(compute_dtype)  # (H, 4H)
            p[f"b_l{l}"] = (raw[f"b_ih_l{l}"] + raw[f"b_hh_l{l}"]
                            ).reshape(1, 4 * H).astype(jnp.float32)
    p["w_dec_t"] = raw["w_dec"].T.astype(compute_dtype)                # (H, O)
    p["b_dec"] = raw["b_dec"].reshape(1, -1).astype(jnp.float32)
    return p


def rnn_forward(input_seq, hidden_state, params, *, hidden_size, output_size,
                num_layers, compute_dtype=jnp.bfloat16, max_t_chunk=8):
    """Equivalent of RNN.forward(input_seq, hidden_state)."""
    h0, c0 = hidden_state
    S, B = input_seq.shape
    H, O, L = hidden_size, output_size, num_layers
    cdt = compute_dtype

    B_pad = _round_up(max(B, 8), 8)       # pad batch to the f32 sublane height
    t_chunk = _pick_chunk(S, max_t_chunk)
    n_chunks = S // t_chunk

    # --- glue (plain JAX): embedding gather + hoisted layer-0 input projection.
    emb = params["embedding"][input_seq]                               # (S, B, E)
    x_proj = (jnp.dot(emb.reshape(S * B, -1).astype(cdt), params["w_ih0_t"],
                      preferred_element_type=jnp.float32)
              + params["b0"]).reshape(S, B, 4 * H)                     # f32

    h0 = h0.astype(jnp.float32)
    c0 = c0.astype(jnp.float32)
    if B_pad != B:
        pad = ((0, 0), (0, B_pad - B), (0, 0))
        x_proj = jnp.pad(x_proj, pad)
        h0 = jnp.pad(h0, pad)
        c0 = jnp.pad(c0, pad)

    args = [x_proj, h0, c0, params["w_hh_t_l0"]]
    in_specs = [
        pl.BlockSpec((t_chunk, B_pad, 4 * H), lambda t: (t, 0, 0)),
        pl.BlockSpec((L, B_pad, H), lambda t: (0, 0, 0)),
        pl.BlockSpec((L, B_pad, H), lambda t: (0, 0, 0)),
        pl.BlockSpec((H, 4 * H), lambda t: (0, 0)),
    ]
    for l in range(1, L):
        args += [params[f"w_ih_t_l{l}"], params[f"w_hh_t_l{l}"], params[f"b_l{l}"]]
        in_specs += [
            pl.BlockSpec((H, 4 * H), lambda t: (0, 0)),
            pl.BlockSpec((H, 4 * H), lambda t: (0, 0)),
            pl.BlockSpec((1, 4 * H), lambda t: (0, 0)),
        ]

    out_shape = (
        jax.ShapeDtypeStruct((S, B_pad, H), cdt),           # top-layer h per step
        jax.ShapeDtypeStruct((L, B_pad, H), jnp.float32),   # final h
        jax.ShapeDtypeStruct((L, B_pad, H), jnp.float32),   # final c
    )
    out_specs = (
        pl.BlockSpec((t_chunk, B_pad, H), lambda t: (t, 0, 0)),
        pl.BlockSpec((L, B_pad, H), lambda t: (0, 0, 0)),
        pl.BlockSpec((L, B_pad, H), lambda t: (0, 0, 0)),
    )

    f = pl.pallas_call(
        make_lstm_kernel(L, H, t_chunk, cdt),
        out_shape=out_shape,
        grid_spec=pltpu.PrefetchScalarGridSpec(
            num_scalar_prefetch=0,
            grid=(n_chunks,),
            in_specs=in_specs,
            out_specs=out_specs,
            scratch_shapes=[
                pltpu.VMEM((L, B_pad, H), jnp.float32),
                pltpu.VMEM((L, B_pad, H), jnp.float32),
            ],
        ),
        compiler_params=pltpu.CompilerParams(
            # Time axis is a serial recurrence -> "arbitrary".  For large real
            # batches, a leading "parallel" batch-tile grid axis would let a
            # second TensorCore run an independent recurrence; at B=2 there is
            # no batch parallelism to shard.
            dimension_semantics=("arbitrary",),
            vmem_limit_bytes=32 * 1024 * 1024,
        ),
    )
    h_seq, h_n, c_n = f(*args)

    # Strip batch padding, then the hoisted decoder as one big batched matmul.
    h_seq = h_seq[:, :B]
    h_n = h_n[:, :B]
    c_n = c_n[:, :B]
    out = (jnp.dot(h_seq.reshape(S * B, H).astype(cdt), params["w_dec_t"],
                   preferred_element_type=jnp.float32)
           + params["b_dec"]).reshape(S, B, O)
    # TODO(synk): .detach() on the returned hidden state is an autograd concept;
    # this forward-only kernel simply returns the values.
    return out, (h_n, c_n)


def rnn_forward_ref(input_seq, hidden_state, params, *, hidden_size, num_layers):
    """Pure-JAX f32 reference (mirrors the PyTorch module) for correctness."""
    H, L = hidden_size, num_layers
    h = [hidden_state[0][l] for l in range(L)]
    c = [hidden_state[1][l] for l in range(L)]
    emb = params["embedding"][input_seq].astype(jnp.float32)
    outs = []
    for t in range(emb.shape[0]):
        x = emb[t]
        for l in range(L):
            gates = (x @ params[f"w_ih_l{l}"].T + params[f"b_ih_l{l}"]
                     + h[l] @ params[f"w_hh_l{l}"].T + params[f"b_hh_l{l}"])
            i_g = jax.nn.sigmoid(gates[:, 0 * H:1 * H])
            f_g = jax.nn.sigmoid(gates[:, 1 * H:2 * H])
            g_g = jnp.tanh(gates[:, 2 * H:3 * H])
            o_g = jax.nn.sigmoid(gates[:, 3 * H:4 * H])
            c[l] = f_g * c[l] + i_g * g_g
            h[l] = o_g * jnp.tanh(c[l])
            x = h[l]
        outs.append(x @ params["w_dec"].T + params["b_dec"])
    return (jnp.stack(outs, 0), (jnp.stack(h, 0), jnp.stack(c, 0)))


def init_params(key, input_size, output_size, hidden_size, num_layers):
    E, H, O = input_size, hidden_size, output_size
    keys = jax.random.split(key, 4 + 4 * num_layers)
    k = iter(keys)
    scale = 1.0 / np.sqrt(H)
    params = {"embedding": jax.random.normal(next(k), (E, E), jnp.float32)}
    for l in range(num_layers):
        in_dim = E if l == 0 else H
        params[f"w_ih_l{l}"] = jax.random.uniform(next(k), (4 * H, in_dim),
                                                  jnp.float32, -scale, scale)
        params[f"w_hh_l{l}"] = jax.random.uniform(next(k), (4 * H, H),
                                                  jnp.float32, -scale, scale)
        params[f"b_ih_l{l}"] = jax.random.uniform(next(k), (4 * H,),
                                                  jnp.float32, -scale, scale)
        params[f"b_hh_l{l}"] = jax.random.uniform(next(k), (4 * H,),
                                                  jnp.float32, -scale, scale)
    params["w_dec"] = jax.random.uniform(next(k), (O, H), jnp.float32, -scale, scale)
    params["b_dec"] = jax.random.uniform(next(k), (O,), jnp.float32, -scale, scale)
    return params


if __name__ == "__main__":
    INPUT_SIZE = 16    # vocab size == embedding dim (per the module)
    OUTPUT_SIZE = 16
    HIDDEN = 32
    NUM_LAYERS = 2
    SEQ = 8
    BATCH = 2

    key = jax.random.PRNGKey(0)
    k_p, k_x, k_h, k_c = jax.random.split(key, 4)

    raw = init_params(k_p, INPUT_SIZE, OUTPUT_SIZE, HIDDEN, NUM_LAYERS)
    input_seq = jax.random.randint(k_x, (SEQ, BATCH), 0, INPUT_SIZE, jnp.int32)
    h0 = jax.random.normal(k_h, (NUM_LAYERS, BATCH, HIDDEN), jnp.float32)
    c0 = jax.random.normal(k_c, (NUM_LAYERS, BATCH, HIDDEN), jnp.float32)

    out_r, (h_r, c_r) = rnn_forward_ref(input_seq, (h0, c0), raw,
                                        hidden_size=HIDDEN,
                                        num_layers=NUM_LAYERS)

    # f32 compute path: tight correctness check against the pure-JAX reference.
    p32 = prepare_params(raw, hidden_size=HIDDEN, num_layers=NUM_LAYERS,
                         compute_dtype=jnp.float32)
    fwd32 = jax.jit(functools.partial(
        rnn_forward, hidden_size=HIDDEN, output_size=OUTPUT_SIZE,
        num_layers=NUM_LAYERS, compute_dtype=jnp.float32, max_t_chunk=4))
    out32, (h32, c32) = fwd32(input_seq, (h0, c0), p32)
    jax.block_until_ready((out32, h32, c32))
    np.testing.assert_allclose(np.asarray(out32), np.asarray(out_r), atol=1e-5, rtol=1e-5)
    np.testing.assert_allclose(np.asarray(h32), np.asarray(h_r), atol=1e-5, rtol=1e-5)
    np.testing.assert_allclose(np.asarray(c32), np.asarray(c_r), atol=1e-5, rtol=1e-5)

    # bf16 MXU path (f32 accumulation, f32 gate math): loose numeric check.
    pbf = prepare_params(raw, hidden_size=HIDDEN, num_layers=NUM_LAYERS,
                         compute_dtype=jnp.bfloat16)
    fwdbf = jax.jit(functools.partial(
        rnn_forward, hidden_size=HIDDEN, output_size=OUTPUT_SIZE,
        num_layers=NUM_LAYERS, compute_dtype=jnp.bfloat16, max_t_chunk=4))
    outbf, (hbf, cbf) = fwdbf(input_seq, (h0, c0), pbf)
    jax.block_until_ready((outbf, hbf, cbf))
    np.testing.assert_allclose(np.asarray(outbf), np.asarray(out_r), atol=1e-1, rtol=1e-1)

    print("KERNEL_OK")
</pallas_src>

<mosaic_0001>
module attributes {stable_mosaic.version = 11 : i64} {
  func.func @kernel(%arg0: i32, %arg1: memref<4x8x128xf32, #tpu.memory_space<vmem>>, %arg2: memref<2x8x32xf32, #tpu.memory_space<vmem>>, %arg3: memref<2x8x32xf32, #tpu.memory_space<vmem>>, %arg4: memref<32x128xf32, #tpu.memory_space<vmem>>, %arg5: memref<32x128xf32, #tpu.memory_space<vmem>>, %arg6: memref<32x128xf32, #tpu.memory_space<vmem>>, %arg7: memref<1x128xf32, #tpu.memory_space<vmem>>, %arg8: memref<4x8x32xf32, #tpu.memory_space<vmem>>, %arg9: memref<2x8x32xf32, #tpu.memory_space<vmem>>, %arg10: memref<2x8x32xf32, #tpu.memory_space<vmem>>, %arg11: memref<2x8x32xf32, #tpu.memory_space<vmem>>, %arg12: memref<2x8x32xf32, #tpu.memory_space<vmem>>) attributes {dimension_semantics = [#tpu.dimension_semantics<arbitrary>], iteration_bounds = array<i64: 2>, scalar_prefetch = 0 : i64, scratch_operands = 2 : i64, tpu.core_type = #tpu.core_type<tc>, window_params = [{transform_indices = @transform_0, window_bounds = array<i64: 4, 8, 128>}, {pipeline_mode = #tpu.pipeline_mode<synchronous>, transform_indices = @transform_1, window_bounds = array<i64: 2, 8, 32>}, {pipeline_mode = #tpu.pipeline_mode<synchronous>, transform_indices = @transform_2, window_bounds = array<i64: 2, 8, 32>}, {pipeline_mode = #tpu.pipeline_mode<synchronous>, transform_indices = @transform_3, window_bounds = array<i64: 32, 128>}, {pipeline_mode = #tpu.pipeline_mode<synchronous>, transform_indices = @transform_4, window_bounds = array<i64: 32, 128>}, {pipeline_mode = #tpu.pipeline_mode<synchronous>, transform_indices = @transform_5, window_bounds = array<i64: 32, 128>}, {pipeline_mode = #tpu.pipeline_mode<synchronous>, transform_indices = @transform_6, window_bounds = array<i64: 1, 128>}, {transform_indices = @transform_7, window_bounds = array<i64: 4, 8, 32>}, {pipeline_mode = #tpu.pipeline_mode<synchronous>, transform_indices = @transform_8, window_bounds = array<i64: 2, 8, 32>}, {pipeline_mode = #tpu.pipeline_mode<synchronous>, transform_indices = @transform_9, window_bounds = array<i64: 2, 8, 32>}]} {
    %c0_i32 = arith.constant 0 : i32
    %0 = arith.cmpi eq, %arg0, %c0_i32 : i32
    %1 = arith.extui %0 : i1 to i32
    %c0_i32_0 = arith.constant 0 : i32
    %2 = arith.cmpi ne, %1, %c0_i32_0 : i32
    scf.if %2 {
      %c0_169 = arith.constant 0 : index
      %c0_170 = arith.constant 0 : index
      %c0_171 = arith.constant 0 : index
      %270 = vector.load %arg2[%c0_169, %c0_170, %c0_171] : memref<2x8x32xf32, #tpu.memory_space<vmem>>, vector<2x8x32xf32>
      %c0_172 = arith.constant 0 : index
      %c0_173 = arith.constant 0 : index
      %c0_174 = arith.constant 0 : index
      %271 = vector.load %arg11[%c0_172, %c0_173, %c0_174] : memref<2x8x32xf32, #tpu.memory_space<vmem>>, vector<2x8x32xf32>
      tpu.vector_store %arg11[%c0_172, %c0_173, %c0_174], %270 {strides = array<i32>} : memref<2x8x32xf32, #tpu.memory_space<vmem>>, vector<2x8x32xf32>,
      %c0_175 = arith.constant 0 : index
      %c0_176 = arith.constant 0 : index
      %c0_177 = arith.constant 0 : index
      %272 = vector.load %arg3[%c0_175, %c0_176, %c0_177] : memref<2x8x32xf32, #tpu.memory_space<vmem>>, vector<2x8x32xf32>
      %c0_178 = arith.constant 0 : index
      %c0_179 = arith.constant 0 : index
      %c0_180 = arith.constant 0 : index
      %273 = vector.load %arg12[%c0_178, %c0_179, %c0_180] : memref<2x8x32xf32, #tpu.memory_space<vmem>>, vector<2x8x32xf32>
      tpu.vector_store %arg12[%c0_178, %c0_179, %c0_180], %272 {strides = array<i32>} : memref<2x8x32xf32, #tpu.memory_space<vmem>>, vector<2x8x32xf32>,
    } else {
    }
    %c0 = arith.constant 0 : index
    %c0_1 = arith.constant 0 : index
    %c0_2 = arith.constant 0 : index
    %3 = vector.load %arg11[%c0, %c0_1, %c0_2] : memref<2x8x32xf32, #tpu.memory_space<vmem>>, vector<1x8x32xf32>
    %4 = vector.shape_cast %3 : vector<1x8x32xf32> to vector<8x32xf32>
    %c0_3 = arith.constant 0 : index
    %c0_4 = arith.constant 0 : index
    %c0_5 = arith.constant 0 : index
    %5 = vector.load %arg12[%c0_3, %c0_4, %c0_5] : memref<2x8x32xf32, #tpu.memory_space<vmem>>, vector<1x8x32xf32>
    %6 = vector.shape_cast %5 : vector<1x8x32xf32> to vector<8x32xf32>
    %c0_6 = arith.constant 0 : index
    %c0_7 = arith.constant 0 : index
    %c0_8 = arith.constant 0 : index
    %7 = vector.load %arg1[%c0_6, %c0_7, %c0_8] : memref<4x8x128xf32, #tpu.memory_space<vmem>>, vector<1x8x128xf32>
    %8 = vector.shape_cast %7 : vector<1x8x128xf32> to vector<8x128xf32>
    %c0_9 = arith.constant 0 : index
    %c0_10 = arith.constant 0 : index
    %9 = vector.load %arg4[%c0_9, %c0_10] : memref<32x128xf32, #tpu.memory_space<vmem>>, vector<32x128xf32>
    %cst = arith.constant dense<0.000000e+00> : vector<8x128xf32>
    %10 = tpu.matmul %4, %9, %cst {dimension_numbers = #tpu.dot_dimension_numbers<[1], [0], [0], [1], [0, 0, 1, 1], [], []>} : vector<8x32xf32>, vector<32x128xf32>, vector<8x128xf32> -> vector<8x128xf32>
    %11 = arith.addf %8, %10 : vector<8x128xf32>
    %12 = arith.negf %11 : vector<8x128xf32>
    %13 = math.exp %12 : vector<8x128xf32>
    %cst_11 = arith.constant 1.000000e+00 : f32
    %14 = vector.broadcast %cst_11 : f32 to vector<8x128xf32>
    %15 = arith.addf %14, %13 : vector<8x128xf32>
    %16 = arith.divf %14, %15 : vector<8x128xf32>
    %17 = vector.extract_strided_slice %16 {offsets = [0, 0], sizes = [8, 32], strides = [1, 1]} : vector<8x128xf32> to vector<8x32xf32>
    %18 = vector.extract_strided_slice %16 {offsets = [0, 32], sizes = [8, 32], strides = [1, 1]} : vector<8x128xf32> to vector<8x32xf32>
    %19 = vector.extract_strided_slice %16 {offsets = [0, 96], sizes = [8, 32], strides = [1, 1]} : vector<8x128xf32> to vector<8x32xf32>
    %20 = vector.extract_strided_slice %11 {offsets = [0, 64], sizes = [8, 32], strides = [1, 1]} : vector<8x128xf32> to vector<8x32xf32>
    %21 = math.tanh %20 : vector<8x32xf32>
    %22 = arith.mulf %18, %6 : vector<8x32xf32>
    %23 = arith.mulf %17, %21 : vector<8x32xf32>
    %24 = arith.addf %22, %23 : vector<8x32xf32>
    %25 = math.tanh %24 : vector<8x32xf32>
    %26 = arith.mulf %19, %25 : vector<8x32xf32>
    %c0_12 = arith.constant 0 : index
    %c0_13 = arith.constant 0 : index
    %c0_14 = arith.constant 0 : index
    %27 = vector.load %arg11[%c0_12, %c0_13, %c0_14] : memref<2x8x32xf32, #tpu.memory_space<vmem>>, vector<1x8x32xf32>
    %28 = vector.shape_cast %27 : vector<1x8x32xf32> to vector<8x32xf32>
    %29 = vector.shape_cast %26 : vector<8x32xf32> to vector<1x8x32xf32>
    tpu.vector_store %arg11[%c0_12, %c0_13, %c0_14], %29 {strides = array<i32>} : memref<2x8x32xf32, #tpu.memory_space<vmem>>, vector<1x8x32xf32>,
    %c0_15 = arith.constant 0 : index
    %c0_16 = arith.constant 0 : index
    %c0_17 = arith.constant 0 : index
    %30 = vector.load %arg12[%c0_15, %c0_16, %c0_17] : memref<2x8x32xf32, #tpu.memory_space<vmem>>, vector<1x8x32xf32>
    %31 = vector.shape_cast %30 : vector<1x8x32xf32> to vector<8x32xf32>
    %32 = vector.shape_cast %24 : vector<8x32xf32> to vector<1x8x32xf32>
    tpu.vector_store %arg12[%c0_15, %c0_16, %c0_17], %32 {strides = array<i32>} : memref<2x8x32xf32, #tpu.memory_space<vmem>>, vector<1x8x32xf32>,
    %c1 = arith.constant 1 : index
    %c0_18 = arith.constant 0 : index
    %c0_19 = arith.constant 0 : index
    %33 = vector.load %arg11[%c1, %c0_18, %c0_19] : memref<2x8x32xf32, #tpu.memory_space<vmem>>, vector<1x8x32xf32>
    %34 = vector.shape_cast %33 : vector<1x8x32xf32> to vector<8x32xf32>
    %c1_20 = arith.constant 1 : index
    %c0_21 = arith.constant 0 : index
    %c0_22 = arith.constant 0 : index
    %35 = vector.load %arg12[%c1_20, %c0_21, %c0_22] : memref<2x8x32xf32, #tpu.memory_space<vmem>>, vector<1x8x32xf32>
    %36 = vector.shape_cast %35 : vector<1x8x32xf32> to vector<8x32xf32>
    %c0_23 = arith.constant 0 : index
    %c0_24 = arith.constant 0 : index
    %37 = vector.load %arg5[%c0_23, %c0_24] : memref<32x128xf32, #tpu.memory_space<vmem>>, vector<32x128xf32>
    %cst_25 = arith.constant dense<0.000000e+00> : vector<8x128xf32>
    %38 = tpu.matmul %26, %37, %cst_25 {dimension_numbers = #tpu.dot_dimension_numbers<[1], [0], [0], [1], [0, 0, 1, 1], [], []>} : vector<8x32xf32>, vector<32x128xf32>, vector<8x128xf32> -> vector<8x128xf32>
    %c0_26 = arith.constant 0 : index
    %c0_27 = arith.constant 0 : index
    %39 = vector.load %arg6[%c0_26, %c0_27] : memref<32x128xf32, #tpu.memory_space<vmem>>, vector<32x128xf32>
    %cst_28 = arith.constant dense<0.000000e+00> : vector<8x128xf32>
    %40 = tpu.matmul %34, %39, %cst_28 {dimension_numbers = #tpu.dot_dimension_numbers<[1], [0], [0], [1], [0, 0, 1, 1], [], []>} : vector<8x32xf32>, vector<32x128xf32>, vector<8x128xf32> -> vector<8x128xf32>
    %41 = arith.addf %38, %40 : vector<8x128xf32>
    %c0_29 = arith.constant 0 : index
    %c0_30 = arith.constant 0 : index
    %42 = vector.load %arg7[%c0_29, %c0_30] : memref<1x128xf32, #tpu.memory_space<vmem>>, vector<1x128xf32>
    %43 = vector.broadcast %42 : vector<1x128xf32> to vector<8x128xf32>
    %44 = arith.addf %41, %43 : vector<8x128xf32>
    %45 = arith.negf %44 : vector<8x128xf32>
    %46 = math.exp %45 : vector<8x128xf32>
    %cst_31 = arith.constant 1.000000e+00 : f32
    %47 = vector.broadcast %cst_31 : f32 to vector<8x128xf32>
    %48 = arith.addf %47, %46 : vector<8x128xf32>
    %49 = arith.divf %47, %48 : vector<8x128xf32>
    %50 = vector.extract_strided_slice %49 {offsets = [0, 0], sizes = [8, 32], strides = [1, 1]} : vector<8x128xf32> to vector<8x32xf32>
    %51 = vector.extract_strided_slice %49 {offsets = [0, 32], sizes = [8, 32], strides = [1, 1]} : vector<8x128xf32> to vector<8x32xf32>
    %52 = vector.extract_strided_slice %49 {offsets = [0, 96], sizes = [8, 32], strides = [1, 1]} : vector<8x128xf32> to vector<8x32xf32>
    %53 = vector.extract_strided_slice %44 {offsets = [0, 64], sizes = [8, 32], strides = [1, 1]} : vector<8x128xf32> to vector<8x32xf32>
    %54 = math.tanh %53 : vector<8x32xf32>
    %55 = arith.mulf %51, %36 : vector<8x32xf32>
    %56 = arith.mulf %50, %54 : vector<8x32xf32>
    %57 = arith.addf %55, %56 : vector<8x32xf32>
    %58 = math.tanh %57 : vector<8x32xf32>
    %59 = arith.mulf %52, %58 : vector<8x32xf32>
    %c1_32 = arith.constant 1 : index
    %c0_33 = arith.constant 0 : index
    %c0_34 = arith.constant 0 : index
    %60 = vector.load %arg11[%c1_32, %c0_33, %c0_34] : memref<2x8x32xf32, #tpu.memory_space<vmem>>, vector<1x8x32xf32>
    %61 = vector.shape_cast %60 : vector<1x8x32xf32> to vector<8x32xf32>
    %62 = vector.shape_cast %59 : vector<8x32xf32> to vector<1x8x32xf32>
    tpu.vector_store %arg11[%c1_32, %c0_33, %c0_34], %62 {strides = array<i32>} : memref<2x8x32xf32, #tpu.memory_space<vmem>>, vector<1x8x32xf32>,
    %c1_35 = arith.constant 1 : index
    %c0_36 = arith.constant 0 : index
    %c0_37 = arith.constant 0 : index
    %63 = vector.load %arg12[%c1_35, %c0_36, %c0_37] : memref<2x8x32xf32, #tpu.memory_space<vmem>>, vector<1x8x32xf32>
    %64 = vector.shape_cast %63 : vector<1x8x32xf32> to vector<8x32xf32>
    %65 = vector.shape_cast %57 : vector<8x32xf32> to vector<1x8x32xf32>
    tpu.vector_store %arg12[%c1_35, %c0_36, %c0_37], %65 {strides = array<i32>} : memref<2x8x32xf32, #tpu.memory_space<vmem>>, vector<1x8x32xf32>,
    %c0_38 = arith.constant 0 : index
    %c0_39 = arith.constant 0 : index
    %c0_40 = arith.constant 0 : index
    %66 = vector.load %arg8[%c0_38, %c0_39, %c0_40] : memref<4x8x32xf32, #tpu.memory_space<vmem>>, vector<1x8x32xf32>
    %67 = vector.shape_cast %66 : vector<1x8x32xf32> to vector<8x32xf32>
    %68 = vector.shape_cast %59 : vector<8x32xf32> to vector<1x8x32xf32>
    tpu.vector_store %arg8[%c0_38, %c0_39, %c0_40], %68 {strides = array<i32>} : memref<4x8x32xf32, #tpu.memory_space<vmem>>, vector<1x8x32xf32>,
    %c0_41 = arith.constant 0 : index
    %c0_42 = arith.constant 0 : index
    %c0_43 = arith.constant 0 : index
    %69 = vector.load %arg11[%c0_41, %c0_42, %c0_43] : memref<2x8x32xf32, #tpu.memory_space<vmem>>, vector<1x8x32xf32>
    %70 = vector.shape_cast %69 : vector<1x8x32xf32> to vector<8x32xf32>
    %c0_44 = arith.constant 0 : index
    %c0_45 = arith.constant 0 : index
    %c0_46 = arith.constant 0 : index
    %71 = vector.load %arg12[%c0_44, %c0_45, %c0_46] : memref<2x8x32xf32, #tpu.memory_space<vmem>>, vector<1x8x32xf32>
    %72 = vector.shape_cast %71 : vector<1x8x32xf32> to vector<8x32xf32>
    %c1_47 = arith.constant 1 : index
    %c0_48 = arith.constant 0 : index
    %c0_49 = arith.constant 0 : index
    %73 = vector.load %arg1[%c1_47, %c0_48, %c0_49] : memref<4x8x128xf32, #tpu.memory_space<vmem>>, vector<1x8x128xf32>
    %74 = vector.shape_cast %73 : vector<1x8x128xf32> to vector<8x128xf32>
    %c0_50 = arith.constant 0 : index
    %c0_51 = arith.constant 0 : index
    %75 = vector.load %arg4[%c0_50, %c0_51] : memref<32x128xf32, #tpu.memory_space<vmem>>, vector<32x128xf32>
    %cst_52 = arith.constant dense<0.000000e+00> : vector<8x128xf32>
    %76 = tpu.matmul %70, %75, %cst_52 {dimension_numbers = #tpu.dot_dimension_numbers<[1], [0], [0], [1], [0, 0, 1, 1], [], []>} : vector<8x32xf32>, vector<32x128xf32>, vector<8x128xf32> -> vector<8x128xf32>
    %77 = arith.addf %74, %76 : vector<8x128xf32>
    %78 = arith.negf %77 : vector<8x128xf32>
    %79 = math.exp %78 : vector<8x128xf32>
    %cst_53 = arith.constant 1.000000e+00 : f32
    %80 = vector.broadcast %cst_53 : f32 to vector<8x128xf32>
    %81 = arith.addf %80, %79 : vector<8x128xf32>
    %82 = arith.divf %80, %81 : vector<8x128xf32>
    %83 = vector.extract_strided_slice %82 {offsets = [0, 0], sizes = [8, 32], strides = [1, 1]} : vector<8x128xf32> to vector<8x32xf32>
    %84 = vector.extract_strided_slice %82 {offsets = [0, 32], sizes = [8, 32], strides = [1, 1]} : vector<8x128xf32> to vector<8x32xf32>
    %85 = vector.extract_strided_slice %82 {offsets = [0, 96], sizes = [8, 32], strides = [1, 1]} : vector<8x128xf32> to vector<8x32xf32>
    %86 = vector.extract_strided_slice %77 {offsets = [0, 64], sizes = [8, 32], strides = [1, 1]} : vector<8x128xf32> to vector<8x32xf32>
    %87 = math.tanh %86 : vector<8x32xf32>
    %88 = arith.mulf %84, %72 : vector<8x32xf32>
    %89 = arith.mulf %83, %87 : vector<8x32xf32>
    %90 = arith.addf %88, %89 : vector<8x32xf32>
    %91 = math.tanh %90 : vector<8x32xf32>
    %92 = arith.mulf %85, %91 : vector<8x32xf32>
    %c0_54 = arith.constant 0 : index
    %c0_55 = arith.constant 0 : index
    %c0_56 = arith.constant 0 : index
    %93 = vector.load %arg11[%c0_54, %c0_55, %c0_56] : memref<2x8x32xf32, #tpu.memory_space<vmem>>, vector<1x8x32xf32>
    %94 = vector.shape_cast %93 : vector<1x8x32xf32> to vector<8x32xf32>
    %95 = vector.shape_cast %92 : vector<8x32xf32> to vector<1x8x32xf32>
    tpu.vector_store %arg11[%c0_54, %c0_55, %c0_56], %95 {strides = array<i32>} : memref<2x8x32xf32, #tpu.memory_space<vmem>>, vector<1x8x32xf32>,
    %c0_57 = arith.constant 0 : index
    %c0_58 = arith.constant 0 : index
    %c0_59 = arith.constant 0 : index
    %96 = vector.load %arg12[%c0_57, %c0_58, %c0_59] : memref<2x8x32xf32, #tpu.memory_space<vmem>>, vector<1x8x32xf32>
    %97 = vector.shape_cast %96 : vector<1x8x32xf32> to vector<8x32xf32>
    %98 = vector.shape_cast %90 : vector<8x32xf32> to vector<1x8x32xf32>
    tpu.vector_store %arg12[%c0_57, %c0_58, %c0_59], %98 {strides = array<i32>} : memref<2x8x32xf32, #tpu.memory_space<vmem>>, vector<1x8x32xf32>,
    %c1_60 = arith.constant 1 : index
    %c0_61 = arith.constant 0 : index
    %c0_62 = arith.constant 0 : index
    %99 = vector.load %arg11[%c1_60, %c0_61, %c0_62] : memref<2x8x32xf32, #tpu.memory_space<vmem>>, vector<1x8x32xf32>
    %100 = vector.shape_cast %99 : vector<1x8x32xf32> to vector<8x32xf32>
    %c1_63 = arith.constant 1 : index
    %c0_64 = arith.constant 0 : index
    %c0_65 = arith.constant 0 : index
    %101 = vector.load %arg12[%c1_63, %c0_64, %c0_65] : memref<2x8x32xf32, #tpu.memory_space<vmem>>, vector<1x8x32xf32>
    %102 = vector.shape_cast %101 : vector<1x8x32xf32> to vector<8x32xf32>
    %c0_66 = arith.constant 0 : index
    %c0_67 = arith.constant 0 : index
    %103 = vector.load %arg5[%c0_66, %c0_67] : memref<32x128xf32, #tpu.memory_space<vmem>>, vector<32x128xf32>
    %cst_68 = arith.constant dense<0.000000e+00> : vector<8x128xf32>
    %104 = tpu.matmul %92, %103, %cst_68 {dimension_numbers = #tpu.dot_dimension_numbers<[1], [0], [0], [1], [0, 0, 1, 1], [], []>} : vector<8x32xf32>, vector<32x128xf32>, vector<8x128xf32> -> vector<8x128xf32>
    %c0_69 = arith.constant 0 : index
    %c0_70 = arith.constant 0 : index
    %105 = vector.load %arg6[%c0_69, %c0_70] : memref<32x128xf32, #tpu.memory_space<vmem>>, vector<32x128xf32>
    %cst_71 = arith.constant dense<0.000000e+00> : vector<8x128xf32>
    %106 = tpu.matmul %100, %105, %cst_71 {dimension_numbers = #tpu.dot_dimension_numbers<[1], [0], [0], [1], [0, 0, 1, 1], [], []>} : vector<8x32xf32>, vector<32x128xf32>, vector<8x128xf32> -> vector<8x128xf32>
    %107 = arith.addf %104, %106 : vector<8x128xf32>
    %c0_72 = arith.constant 0 : index
    %c0_73 = arith.constant 0 : index
    %108 = vector.load %arg7[%c0_72, %c0_73] : memref<1x128xf32, #tpu.memory_space<vmem>>, vector<1x128xf32>
    %109 = vector.broadcast %108 : vector<1x128xf32> to vector<8x128xf32>
    %110 = arith.addf %107, %109 : vector<8x128xf32>
    %111 = arith.negf %110 : vector<8x128xf32>
    %112 = math.exp %111 : vector<8x128xf32>
    %cst_74 = arith.constant 1.000000e+00 : f32
    %113 = vector.broadcast %cst_74 : f32 to vector<8x128xf32>
    %114 = arith.addf %113, %112 : vector<8x128xf32>
    %115 = arith.divf %113, %114 : vector<8x128xf32>
    %116 = vector.extract_strided_slice %115 {offsets = [0, 0], sizes = [8, 32], strides = [1, 1]} : vector<8x128xf32> to vector<8x32xf32>
    %117 = vector.extract_strided_slice %115 {offsets = [0, 32], sizes = [8, 32], strides = [1, 1]} : vector<8x128xf32> to vector<8x32xf32>
    %118 = vector.extract_strided_slice %115 {offsets = [0, 96], sizes = [8, 32], strides = [1, 1]} : vector<8x128xf32> to vector<8x32xf32>
    %119 = vector.extract_strided_slice %110 {offsets = [0, 64], sizes = [8, 32], strides = [1, 1]} : vector<8x128xf32> to vector<8x32xf32>
    %120 = math.tanh %119 : vector<8x32xf32>
    %121 = arith.mulf %117, %102 : vector<8x32xf32>
    %122 = arith.mulf %116, %120 : vector<8x32xf32>
    %123 = arith.addf %121, %122 : vector<8x32xf32>
    %124 = math.tanh %123 : vector<8x32xf32>
    %125 = arith.mulf %118, %124 : vector<8x32xf32>
    %c1_75 = arith.constant 1 : index
    %c0_76 = arith.constant 0 : index
    %c0_77 = arith.constant 0 : index
    %126 = vector.load %arg11[%c1_75, %c0_76, %c0_77] : memref<2x8x32xf32, #tpu.memory_space<vmem>>, vector<1x8x32xf32>
    %127 = vector.shape_cast %126 : vector<1x8x32xf32> to vector<8x32xf32>
    %128 = vector.shape_cast %125 : vector<8x32xf32> to vector<1x8x32xf32>
    tpu.vector_store %arg11[%c1_75, %c0_76, %c0_77], %128 {strides = array<i32>} : memref<2x8x32xf32, #tpu.memory_space<vmem>>, vector<1x8x32xf32>,
    %c1_78 = arith.constant 1 : index
    %c0_79 = arith.constant 0 : index
    %c0_80 = arith.constant 0 : index
    %129 = vector.load %arg12[%c1_78, %c0_79, %c0_80] : memref<2x8x32xf32, #tpu.memory_space<vmem>>, vector<1x8x32xf32>
    %130 = vector.shape_cast %129 : vector<1x8x32xf32> to vector<8x32xf32>
    %131 = vector.shape_cast %123 : vector<8x32xf32> to vector<1x8x32xf32>
    tpu.vector_store %arg12[%c1_78, %c0_79, %c0_80], %131 {strides = array<i32>} : memref<2x8x32xf32, #tpu.memory_space<vmem>>, vector<1x8x32xf32>,
    %c1_81 = arith.constant 1 : index
    %c0_82 = arith.constant 0 : index
    %c0_83 = arith.constant 0 : index
    %132 = vector.load %arg8[%c1_81, %c0_82, %c0_83] : memref<4x8x32xf32, #tpu.memory_space<vmem>>, vector<1x8x32xf32>
    %133 = vector.shape_cast %132 : vector<1x8x32xf32> to vector<8x32xf32>
    %134 = vector.shape_cast %125 : vector<8x32xf32> to vector<1x8x32xf32>
    tpu.vector_store %arg8[%c1_81, %c0_82, %c0_83], %134 {strides = array<i32>} : memref<4x8x32xf32, #tpu.memory_space<vmem>>, vector<1x8x32xf32>,
    %c0_84 = arith.constant 0 : index
    %c0_85 = arith.constant 0 : index
    %c0_86 = arith.constant 0 : index
    %135 = vector.load %arg11[%c0_84, %c0_85, %c0_86] : memref<2x8x32xf32, #tpu.memory_space<vmem>>, vector<1x8x32xf32>
    %136 = vector.shape_cast %135 : vector<1x8x32xf32> to vector<8x32xf32>
    %c0_87 = arith.constant 0 : index
    %c0_88 = arith.constant 0 : index
    %c0_89 = arith.constant 0 : index
    %137 = vector.load %arg12[%c0_87, %c0_88, %c0_89] : memref<2x8x32xf32, #tpu.memory_space<vmem>>, vector<1x8x32xf32>
    %138 = vector.shape_cast %137 : vector<1x8x32xf32> to vector<8x32xf32>
    %c2 = arith.constant 2 : index
    %c0_90 = arith.constant 0 : index
    %c0_91 = arith.constant 0 : index
    %139 = vector.load %arg1[%c2, %c0_90, %c0_91] : memref<4x8x128xf32, #tpu.memory_space<vmem>>, vector<1x8x128xf32>
    %140 = vector.shape_cast %139 : vector<1x8x128xf32> to vector<8x128xf32>
    %c0_92 = arith.constant 0 : index
    %c0_93 = arith.constant 0 : index
    %141 = vector.load %arg4[%c0_92, %c0_93] : memref<32x128xf32, #tpu.memory_space<vmem>>, vector<32x128xf32>
    %cst_94 = arith.constant dense<0.000000e+00> : vector<8x128xf32>
    %142 = tpu.matmul %136, %141, %cst_94 {dimension_numbers = #tpu.dot_dimension_numbers<[1], [0], [0], [1], [0, 0, 1, 1], [], []>} : vector<8x32xf32>, vector<32x128xf32>, vector<8x128xf32> -> vector<8x128xf32>
    %143 = arith.addf %140, %142 : vector<8x128xf32>
    %144 = arith.negf %143 : vector<8x128xf32>
    %145 = math.exp %144 : vector<8x128xf32>
    %cst_95 = arith.constant 1.000000e+00 : f32
    %146 = vector.broadcast %cst_95 : f32 to vector<8x128xf32>
    %147 = arith.addf %146, %145 : vector<8x128xf32>
    %148 = arith.divf %146, %147 : vector<8x128xf32>
    %149 = vector.extract_strided_slice %148 {offsets = [0, 0], sizes = [8, 32], strides = [1, 1]} : vector<8x128xf32> to vector<8x32xf32>
    %150 = vector.extract_strided_slice %148 {offsets = [0, 32], sizes = [8, 32], strides = [1, 1]} : vector<8x128xf32> to vector<8x32xf32>
    %151 = vector.extract_strided_slice %148 {offsets = [0, 96], sizes = [8, 32], strides = [1, 1]} : vector<8x128xf32> to vector<8x32xf32>
    %152 = vector.extract_strided_slice %143 {offsets = [0, 64], sizes = [8, 32], strides = [1, 1]} : vector<8x128xf32> to vector<8x32xf32>
    %153 = math.tanh %152 : vector<8x32xf32>
    %154 = arith.mulf %150, %138 : vector<8x32xf32>
    %155 = arith.mulf %149, %153 : vector<8x32xf32>
    %156 = arith.addf %154, %155 : vector<8x32xf32>
    %157 = math.tanh %156 : vector<8x32xf32>
    %158 = arith.mulf %151, %157 : vector<8x32xf32>
    %c0_96 = arith.constant 0 : index
    %c0_97 = arith.constant 0 : index
    %c0_98 = arith.constant 0 : index
    %159 = vector.load %arg11[%c0_96, %c0_97, %c0_98] : memref<2x8x32xf32, #tpu.memory_space<vmem>>, vector<1x8x32xf32>
    %160 = vector.shape_cast %159 : vector<1x8x32xf32> to vector<8x32xf32>
    %161 = vector.shape_cast %158 : vector<8x32xf32> to vector<1x8x32xf32>
    tpu.vector_store %arg11[%c0_96, %c0_97, %c0_98], %161 {strides = array<i32>} : memref<2x8x32xf32, #tpu.memory_space<vmem>>, vector<1x8x32xf32>,
    %c0_99 = arith.constant 0 : index
    %c0_100 = arith.constant 0 : index
    %c0_101 = arith.constant 0 : index
    %162 = vector.load %arg12[%c0_99, %c0_100, %c0_101] : memref<2x8x32xf32, #tpu.memory_space<vmem>>, vector<1x8x32xf32>
    %163 = vector.shape_cast %162 : vector<1x8x32xf32> to vector<8x32xf32>
    %164 = vector.shape_cast %156 : vector<8x32xf32> to vector<1x8x32xf32>
    tpu.vector_store %arg12[%c0_99, %c0_100, %c0_101], %164 {strides = array<i32>} : memref<2x8x32xf32, #tpu.memory_space<vmem>>, vector<1x8x32xf32>,
    %c1_102 = arith.constant 1 : index
    %c0_103 = arith.constant 0 : index
    %c0_104 = arith.constant 0 : index
    %165 = vector.load %arg11[%c1_102, %c0_103, %c0_104] : memref<2x8x32xf32, #tpu.memory_space<vmem>>, vector<1x8x32xf32>
    %166 = vector.shape_cast %165 : vector<1x8x32xf32> to vector<8x32xf32>
    %c1_105 = arith.constant 1 : index
    %c0_106 = arith.constant 0 : index
    %c0_107 = arith.constant 0 : index
    %167 = vector.load %arg12[%c1_105, %c0_106, %c0_107] : memref<2x8x32xf32, #tpu.memory_space<vmem>>, vector<1x8x32xf32>
    %168 = vector.shape_cast %167 : vector<1x8x32xf32> to vector<8x32xf32>
    %c0_108 = arith.constant 0 : index
    %c0_109 = arith.constant 0 : index
    %169 = vector.load %arg5[%c0_108, %c0_109] : memref<32x128xf32, #tpu.memory_space<vmem>>, vector<32x128xf32>
    %cst_110 = arith.constant dense<0.000000e+00> : vector<8x128xf32>
    %170 = tpu.matmul %158, %169, %cst_110 {dimension_numbers = #tpu.dot_dimension_numbers<[1], [0], [0], [1], [0, 0, 1, 1], [], []>} : vector<8x32xf32>, vector<32x128xf32>, vector<8x128xf32> -> vector<8x128xf32>
    %c0_111 = arith.constant 0 : index
    %c0_112 = arith.constant 0 : index
    %171 = vector.load %arg6[%c0_111, %c0_112] : memref<32x128xf32, #tpu.memory_space<vmem>>, vector<32x128xf32>
    %cst_113 = arith.constant dense<0.000000e+00> : vector<8x128xf32>
    %172 = tpu.matmul %166, %171, %cst_113 {dimension_numbers = #tpu.dot_dimension_numbers<[1], [0], [0], [1], [0, 0, 1, 1], [], []>} : vector<8x32xf32>, vector<32x128xf32>, vector<8x128xf32> -> vector<8x128xf32>
    %173 = arith.addf %170, %172 : vector<8x128xf32>
    %c0_114 = arith.constant 0 : index
    %c0_115 = arith.constant 0 : index
    %174 = vector.load %arg7[%c0_114, %c0_115] : memref<1x128xf32, #tpu.memory_space<vmem>>, vector<1x128xf32>
    %175 = vector.broadcast %174 : vector<1x128xf32> to vector<8x128xf32>
    %176 = arith.addf %173, %175 : vector<8x128xf32>
    %177 = arith.negf %176 : vector<8x128xf32>
    %178 = math.exp %177 : vector<8x128xf32>
    %cst_116 = arith.constant 1.000000e+00 : f32
    %179 = vector.broadcast %cst_116 : f32 to vector<8x128xf32>
    %180 = arith.addf %179, %178 : vector<8x128xf32>
    %181 = arith.divf %179, %180 : vector<8x128xf32>
    %182 = vector.extract_strided_slice %181 {offsets = [0, 0], sizes = [8, 32], strides = [1, 1]} : vector<8x128xf32> to vector<8x32xf32>
    %183 = vector.extract_strided_slice %181 {offsets = [0, 32], sizes = [8, 32], strides = [1, 1]} : vector<8x128xf32> to vector<8x32xf32>
    %184 = vector.extract_strided_slice %181 {offsets = [0, 96], sizes = [8, 32], strides = [1, 1]} : vector<8x128xf32> to vector<8x32xf32>
    %185 = vector.extract_strided_slice %176 {offsets = [0, 64], sizes = [8, 32], strides = [1, 1]} : vector<8x128xf32> to vector<8x32xf32>
    %186 = math.tanh %185 : vector<8x32xf32>
    %187 = arith.mulf %183, %168 : vector<8x32xf32>
    %188 = arith.mulf %182, %186 : vector<8x32xf32>
    %189 = arith.addf %187, %188 : vector<8x32xf32>
    %190 = math.tanh %189 : vector<8x32xf32>
    %191 = arith.mulf %184, %190 : vector<8x32xf32>
    %c1_117 = arith.constant 1 : index
    %c0_118 = arith.constant 0 : index
    %c0_119 = arith.constant 0 : index
    %192 = vector.load %arg11[%c1_117, %c0_118, %c0_119] : memref<2x8x32xf32, #tpu.memory_space<vmem>>, vector<1x8x32xf32>
    %193 = vector.shape_cast %192 : vector<1x8x32xf32> to vector<8x32xf32>
    %194 = vector.shape_cast %191 : vector<8x32xf32> to vector<1x8x32xf32>
    tpu.vector_store %arg11[%c1_117, %c0_118, %c0_119], %194 {strides = array<i32>} : memref<2x8x32xf32, #tpu.memory_space<vmem>>, vector<1x8x32xf32>,
    %c1_120 = arith.constant 1 : index
    %c0_121 = arith.constant 0 : index
    %c0_122 = arith.constant 0 : index
    %195 = vector.load %arg12[%c1_120, %c0_121, %c0_122] : memref<2x8x32xf32, #tpu.memory_space<vmem>>, vector<1x8x32xf32>
    %196 = vector.shape_cast %195 : vector<1x8x32xf32> to vector<8x32xf32>
    %197 = vector.shape_cast %189 : vector<8x32xf32> to vector<1x8x32xf32>
    tpu.vector_store %arg12[%c1_120, %c0_121, %c0_122], %197 {strides = array<i32>} : memref<2x8x32xf32, #tpu.memory_space<vmem>>, vector<1x8x32xf32>,
    %c2_123 = arith.constant 2 : index
    %c0_124 = arith.constant 0 : index
    %c0_125 = arith.constant 0 : index
    %198 = vector.load %arg8[%c2_123, %c0_124, %c0_125] : memref<4x8x32xf32, #tpu.memory_space<vmem>>, vector<1x8x32xf32>
    %199 = vector.shape_cast %198 : vector<1x8x32xf32> to vector<8x32xf32>
    %200 = vector.shape_cast %191 : vector<8x32xf32> to vector<1x8x32xf32>
    tpu.vector_store %arg8[%c2_123, %c0_124, %c0_125], %200 {strides = array<i32>} : memref<4x8x32xf32, #tpu.memory_space<vmem>>, vector<1x8x32xf32>,
    %c0_126 = arith.constant 0 : index
    %c0_127 = arith.constant 0 : index
    %c0_128 = arith.constant 0 : index
    %201 = vector.load %arg11[%c0_126, %c0_127, %c0_128] : memref<2x8x32xf32, #tpu.memory_space<vmem>>, vector<1x8x32xf32>
    %202 = vector.shape_cast %201 : vector<1x8x32xf32> to vector<8x32xf32>
    %c0_129 = arith.constant 0 : index
    %c0_130 = arith.constant 0 : index
    %c0_131 = arith.constant 0 : index
    %203 = vector.load %arg12[%c0_129, %c0_130, %c0_131] : memref<2x8x32xf32, #tpu.memory_space<vmem>>, vector<1x8x32xf32>
    %204 = vector.shape_cast %203 : vector<1x8x32xf32> to vector<8x32xf32>
    %c3 = arith.constant 3 : index
    %c0_132 = arith.constant 0 : index
    %c0_133 = arith.constant 0 : index
    %205 = vector.load %arg1[%c3, %c0_132, %c0_133] : memref<4x8x128xf32, #tpu.memory_space<vmem>>, vector<1x8x128xf32>
    %206 = vector.shape_cast %205 : vector<1x8x128xf32> to vector<8x128xf32>
    %c0_134 = arith.constant 0 : index
    %c0_135 = arith.constant 0 : index
    %207 = vector.load %arg4[%c0_134, %c0_135] : memref<32x128xf32, #tpu.memory_space<vmem>>, vector<32x128xf32>
    %cst_136 = arith.constant dense<0.000000e+00> : vector<8x128xf32>
    %208 = tpu.matmul %202, %207, %cst_136 {dimension_numbers = #tpu.dot_dimension_numbers<[1], [0], [0], [1], [0, 0, 1, 1], [], []>} : vector<8x32xf32>, vector<32x128xf32>, vector<8x128xf32> -> vector<8x128xf32>
    %209 = arith.addf %206, %208 : vector<8x128xf32>
    %210 = arith.negf %209 : vector<8x128xf32>
    %211 = math.exp %210 : vector<8x128xf32>
    %cst_137 = arith.constant 1.000000e+00 : f32
    %212 = vector.broadcast %cst_137 : f32 to vector<8x128xf32>
    %213 = arith.addf %212, %211 : vector<8x128xf32>
    %214 = arith.divf %212, %213 : vector<8x128xf32>
    %215 = vector.extract_strided_slice %214 {offsets = [0, 0], sizes = [8, 32], strides = [1, 1]} : vector<8x128xf32> to vector<8x32xf32>
    %216 = vector.extract_strided_slice %214 {offsets = [0, 32], sizes = [8, 32], strides = [1, 1]} : vector<8x128xf32> to vector<8x32xf32>
    %217 = vector.extract_strided_slice %214 {offsets = [0, 96], sizes = [8, 32], strides = [1, 1]} : vector<8x128xf32> to vector<8x32xf32>
    %218 = vector.extract_strided_slice %209 {offsets = [0, 64], sizes = [8, 32], strides = [1, 1]} : vector<8x128xf32> to vector<8x32xf32>
    %219 = math.tanh %218 : vector<8x32xf32>
    %220 = arith.mulf %216, %204 : vector<8x32xf32>
    %221 = arith.mulf %215, %219 : vector<8x32xf32>
    %222 = arith.addf %220, %221 : vector<8x32xf32>
    %223 = math.tanh %222 : vector<8x32xf32>
    %224 = arith.mulf %217, %223 : vector<8x32xf32>
    %c0_138 = arith.constant 0 : index
    %c0_139 = arith.constant 0 : index
    %c0_140 = arith.constant 0 : index
    %225 = vector.load %arg11[%c0_138, %c0_139, %c0_140] : memref<2x8x32xf32, #tpu.memory_space<vmem>>, vector<1x8x32xf32>
    %226 = vector.shape_cast %225 : vector<1x8x32xf32> to vector<8x32xf32>
    %227 = vector.shape_cast %224 : vector<8x32xf32> to vector<1x8x32xf32>
    tpu.vector_store %arg11[%c0_138, %c0_139, %c0_140], %227 {strides = array<i32>} : memref<2x8x32xf32, #tpu.memory_space<vmem>>, vector<1x8x32xf32>,
    %c0_141 = arith.constant 0 : index
    %c0_142 = arith.constant 0 : index
    %c0_143 = arith.constant 0 : index
    %228 = vector.load %arg12[%c0_141, %c0_142, %c0_143] : memref<2x8x32xf32, #tpu.memory_space<vmem>>, vector<1x8x32xf32>
    %229 = vector.shape_cast %228 : vector<1x8x32xf32> to vector<8x32xf32>
    %230 = vector.shape_cast %222 : vector<8x32xf32> to vector<1x8x32xf32>
    tpu.vector_store %arg12[%c0_141, %c0_142, %c0_143], %230 {strides = array<i32>} : memref<2x8x32xf32, #tpu.memory_space<vmem>>, vector<1x8x32xf32>,
    %c1_144 = arith.constant 1 : index
    %c0_145 = arith.constant 0 : index
    %c0_146 = arith.constant 0 : index
    %231 = vector.load %arg11[%c1_144, %c0_145, %c0_146] : memref<2x8x32xf32, #tpu.memory_space<vmem>>, vector<1x8x32xf32>
    %232 = vector.shape_cast %231 : vector<1x8x32xf32> to vector<8x32xf32>
    %c1_147 = arith.constant 1 : index
    %c0_148 = arith.constant 0 : index
    %c0_149 = arith.constant 0 : index
    %233 = vector.load %arg12[%c1_147, %c0_148, %c0_149] : memref<2x8x32xf32, #tpu.memory_space<vmem>>, vector<1x8x32xf32>
    %234 = vector.shape_cast %233 : vector<1x8x32xf32> to vector<8x32xf32>
    %c0_150 = arith.constant 0 : index
    %c0_151 = arith.constant 0 : index
    %235 = vector.load %arg5[%c0_150, %c0_151] : memref<32x128xf32, #tpu.memory_space<vmem>>, vector<32x128xf32>
    %cst_152 = arith.constant dense<0.000000e+00> : vector<8x128xf32>
    %236 = tpu.matmul %224, %235, %cst_152 {dimension_numbers = #tpu.dot_dimension_numbers<[1], [0], [0], [1], [0, 0, 1, 1], [], []>} : vector<8x32xf32>, vector<32x128xf32>, vector<8x128xf32> -> vector<8x128xf32>
    %c0_153 = arith.constant 0 : index
    %c0_154 = arith.constant 0 : index
    %237 = vector.load %arg6[%c0_153, %c0_154] : memref<32x128xf32, #tpu.memory_space<vmem>>, vector<32x128xf32>
    %cst_155 = arith.constant dense<0.000000e+00> : vector<8x128xf32>
    %238 = tpu.matmul %232, %237, %cst_155 {dimension_numbers = #tpu.dot_dimension_numbers<[1], [0], [0], [1], [0, 0, 1, 1], [], []>} : vector<8x32xf32>, vector<32x128xf32>, vector<8x128xf32> -> vector<8x128xf32>
    %239 = arith.addf %236, %238 : vector<8x128xf32>
    %c0_156 = arith.constant 0 : index
    %c0_157 = arith.constant 0 : index
    %240 = vector.load %arg7[%c0_156, %c0_157] : memref<1x128xf32, #tpu.memory_space<vmem>>, vector<1x128xf32>
    %241 = vector.broadcast %240 : vector<1x128xf32> to vector<8x128xf32>
    %242 = arith.addf %239, %241 : vector<8x128xf32>
    %243 = arith.negf %242 : vector<8x128xf32>
    %244 = math.exp %243 : vector<8x128xf32>
    %cst_158 = arith.constant 1.000000e+00 : f32
    %245 = vector.broadcast %cst_158 : f32 to vector<8x128xf32>
    %246 = arith.addf %245, %244 : vector<8x128xf32>
    %247 = arith.divf %245, %246 : vector<8x128xf32>
    %248 = vector.extract_strided_slice %247 {offsets = [0, 0], sizes = [8, 32], strides = [1, 1]} : vector<8x128xf32> to vector<8x32xf32>
    %249 = vector.extract_strided_slice %247 {offsets = [0, 32], sizes = [8, 32], strides = [1, 1]} : vector<8x128xf32> to vector<8x32xf32>
    %250 = vector.extract_strided_slice %247 {offsets = [0, 96], sizes = [8, 32], strides = [1, 1]} : vector<8x128xf32> to vector<8x32xf32>
    %251 = vector.extract_strided_slice %242 {offsets = [0, 64], sizes = [8, 32], strides = [1, 1]} : vector<8x128xf32> to vector<8x32xf32>
    %252 = math.tanh %251 : vector<8x32xf32>
    %253 = arith.mulf %249, %234 : vector<8x32xf32>
    %254 = arith.mulf %248, %252 : vector<8x32xf32>
    %255 = arith.addf %253, %254 : vector<8x32xf32>
    %256 = math.tanh %255 : vector<8x32xf32>
    %257 = arith.mulf %250, %256 : vector<8x32xf32>
    %c1_159 = arith.constant 1 : index
    %c0_160 = arith.constant 0 : index
    %c0_161 = arith.constant 0 : index
    %258 = vector.load %arg11[%c1_159, %c0_160, %c0_161] : memref<2x8x32xf32, #tpu.memory_space<vmem>>, vector<1x8x32xf32>
    %259 = vector.shape_cast %258 : vector<1x8x32xf32> to vector<8x32xf32>
    %260 = vector.shape_cast %257 : vector<8x32xf32> to vector<1x8x32xf32>
    tpu.vector_store %arg11[%c1_159, %c0_160, %c0_161], %260 {strides = array<i32>} : memref<2x8x32xf32, #tpu.memory_space<vmem>>, vector<1x8x32xf32>,
    %c1_162 = arith.constant 1 : index
    %c0_163 = arith.constant 0 : index
    %c0_164 = arith.constant 0 : index
    %261 = vector.load %arg12[%c1_162, %c0_163, %c0_164] : memref<2x8x32xf32, #tpu.memory_space<vmem>>, vector<1x8x32xf32>
    %262 = vector.shape_cast %261 : vector<1x8x32xf32> to vector<8x32xf32>
    %263 = vector.shape_cast %255 : vector<8x32xf32> to vector<1x8x32xf32>
    tpu.vector_store %arg12[%c1_162, %c0_163, %c0_164], %263 {strides = array<i32>} : memref<2x8x32xf32, #tpu.memory_space<vmem>>, vector<1x8x32xf32>,
    %c3_165 = arith.constant 3 : index
    %c0_166 = arith.constant 0 : index
    %c0_167 = arith.constant 0 : index
    %264 = vector.load %arg8[%c3_165, %c0_166, %c0_167] : memref<4x8x32xf32, #tpu.memory_space<vmem>>, vector<1x8x32xf32>
    %265 = vector.shape_cast %264 : vector<1x8x32xf32> to vector<8x32xf32>
    %266 = vector.shape_cast %257 : vector<8x32xf32> to vector<1x8x32xf32>
    tpu.vector_store %arg8[%c3_165, %c0_166, %c0_167], %266 {strides = array<i32>} : memref<4x8x32xf32, #tpu.memory_space<vmem>>, vector<1x8x32xf32>,
    %c1_i32 = arith.constant 1 : i32
    %267 = arith.cmpi eq, %arg0, %c1_i32 : i32
    %268 = arith.extui %267 : i1 to i32
    %c0_i32_168 = arith.constant 0 : i32
    %269 = arith.cmpi ne, %268, %c0_i32_168 : i32
    scf.if %269 {
      %c0_169 = arith.constant 0 : index
      %c0_170 = arith.constant 0 : index
      %c0_171 = arith.constant 0 : index
      %270 = vector.load %arg11[%c0_169, %c0_170, %c0_171] : memref<2x8x32xf32, #tpu.memory_space<vmem>>, vector<2x8x32xf32>
      %c0_172 = arith.constant 0 : index
      %c0_173 = arith.constant 0 : index
      %c0_174 = arith.constant 0 : index
      %271 = vector.load %arg9[%c0_172, %c0_173, %c0_174] : memref<2x8x32xf32, #tpu.memory_space<vmem>>, vector<2x8x32xf32>
      tpu.vector_store %arg9[%c0_172, %c0_173, %c0_174], %270 {strides = array<i32>} : memref<2x8x32xf32, #tpu.memory_space<vmem>>, vector<2x8x32xf32>,
      %c0_175 = arith.constant 0 : index
      %c0_176 = arith.constant 0 : index
      %c0_177 = arith.constant 0 : index
      %272 = vector.load %arg12[%c0_175, %c0_176, %c0_177] : memref<2x8x32xf32, #tpu.memory_space<vmem>>, vector<2x8x32xf32>
      %c0_178 = arith.constant 0 : index
      %c0_179 = arith.constant 0 : index
      %c0_180 = arith.constant 0 : index
      %273 = vector.load %arg10[%c0_178, %c0_179, %c0_180] : memref<2x8x32xf32, #tpu.memory_space<vmem>>, vector<2x8x32xf32>
      tpu.vector_store %arg10[%c0_178, %c0_179, %c0_180], %272 {strides = array<i32>} : memref<2x8x32xf32, #tpu.memory_space<vmem>>, vector<2x8x32xf32>,
    } else {
    }
    return
  }
  func.func @transform_0(%arg0: i32) -> (i32, i32, i32) {
    %c0_i32 = arith.constant 0 : i32
    %c0_i32_0 = arith.constant 0 : i32
    %c0_i32_1 = arith.constant 0 : i32
    return %arg0, %c0_i32, %c0_i32_0 : i32, i32, i32
  }
  func.func @transform_1(%arg0: i32) -> (i32, i32, i32) {
    %c0_i32 = arith.constant 0 : i32
    %c0_i32_0 = arith.constant 0 : i32
    %c0_i32_1 = arith.constant 0 : i32
    %c0_i32_2 = arith.constant 0 : i32
    return %c0_i32, %c0_i32_0, %c0_i32_1 : i32, i32, i32
  }
  func.func @transform_2(%arg0: i32) -> (i32, i32, i32) {
    %c0_i32 = arith.constant 0 : i32
    %c0_i32_0 = arith.constant 0 : i32
    %c0_i32_1 = arith.constant 0 : i32
    %c0_i32_2 = arith.constant 0 : i32
    return %c0_i32, %c0_i32_0, %c0_i32_1 : i32, i32, i32
  }
  func.func @transform_3(%arg0: i32) -> (i32, i32) {
    %c0_i32 = arith.constant 0 : i32
    %c0_i32_0 = arith.constant 0 : i32
    %c0_i32_1 = arith.constant 0 : i32
    return %c0_i32, %c0_i32_0 : i32, i32
  }
  func.func @transform_4(%arg0: i32) -> (i32, i32) {
    %c0_i32 = arith.constant 0 : i32
    %c0_i32_0 = arith.constant 0 : i32
    %c0_i32_1 = arith.constant 0 : i32
    return %c0_i32, %c0_i32_0 : i32, i32
  }
  func.func @transform_5(%arg0: i32) -> (i32, i32) {
    %c0_i32 = arith.constant 0 : i32
    %c0_i32_0 = arith.constant 0 : i32
    %c0_i32_1 = arith.constant 0 : i32
    return %c0_i32, %c0_i32_0 : i32, i32
  }
  func.func @transform_6(%arg0: i32) -> (i32, i32) {
    %c0_i32 = arith.constant 0 : i32
    %c0_i32_0 = arith.constant 0 : i32
    %c0_i32_1 = arith.constant 0 : i32
    return %c0_i32, %c0_i32_0 : i32, i32
  }
  func.func @transform_7(%arg0: i32) -> (i32, i32, i32) {
    %c0_i32 = arith.constant 0 : i32
    %c0_i32_0 = arith.constant 0 : i32
    %c0_i32_1 = arith.constant 0 : i32
    return %arg0, %c0_i32, %c0_i32_0 : i32, i32, i32
  }
  func.func @transform_8(%arg0: i32) -> (i32, i32, i32) {
    %c0_i32 = arith.constant 0 : i32
    %c0_i32_0 = arith.constant 0 : i32
    %c0_i32_1 = arith.constant 0 : i32
    %c0_i32_2 = arith.constant 0 : i32
    return %c0_i32, %c0_i32_0, %c0_i32_1 : i32, i32, i32
  }
  func.func @transform_9(%arg0: i32) -> (i32, i32, i32) {
    %c0_i32 = arith.constant 0 : i32
    %c0_i32_0 = arith.constant 0 : i32
    %c0_i32_1 = arith.constant 0 : i32
    %c0_i32_2 = arith.constant 0 : i32
    return %c0_i32, %c0_i32_0, %c0_i32_1 : i32, i32, i32
  }
}

</mosaic_0001>

<llo_original>
// kernel: rnn_forward.1
$region0: #{rnn_forward.1}
  #allocation0 [shape = 'u32[]', space=smem, size = 0x4, offset = 0x4, fixed_abs, tag = 'smem constant byte address 0x4 - core index']
  #allocation1 [shape = 'u32[144,128]{1,0:T(1,128)}', space=vmem, size = 0x12000, scoped, tag = 'internal scratch']
  #allocation2 [shape = 'f32[2,8,32]{2,1,0:T(8,128)}', space=vmem, size = 0x2000, scoped, tag = 'scratch operand']
  #allocation3 [shape = 'f32[2,8,32]{2,1,0:T(8,128)}', space=vmem, size = 0x2000, scoped, tag = 'scratch operand']
  %s0 = inlined_call_operand.vmem [shape: f32[8,8,128], index: 0, kind: input, shape index: {}]
  %s1 = inlined_call_operand.vmem [shape: f32[2,8,32], index: 1, kind: input, shape index: {}]
  %s2 = inlined_call_operand.vmem [shape: f32[2,8,32], index: 2, kind: input, shape index: {}]
  %s3 = inlined_call_operand.vmem [shape: f32[32,128], index: 3, kind: input, shape index: {}]
  %s4 = inlined_call_operand.vmem [shape: f32[32,128], index: 4, kind: input, shape index: {}]
  %s5 = inlined_call_operand.vmem [shape: f32[32,128], index: 5, kind: input, shape index: {}]
  %s6 = inlined_call_operand.vmem [shape: f32[1,128], index: 6, kind: input, shape index: {}]
  %s7 = inlined_call_operand.vmem [shape: f32[8,8,32], index: 7, kind: output, shape index: {0}]
  %s8 = inlined_call_operand.vmem [shape: f32[2,8,32], index: 8, kind: output, shape index: {1}]
  %s9 = inlined_call_operand.vmem [shape: f32[2,8,32], index: 9, kind: output, shape index: {2}]
  %10 = xla_tuple %s7, %s8, %s9
  %s11 = sld [smem:[#allocation0]]
  $region85: #{rnn_forward.1} parent=0
    _
  %s13 = ssub.s32 1, %s11
  %s14 = scalar_select 0, %s13, %s11
  loop: start=0, step=1, limit=4
  $region2: #{rnn_forward.1} parent=0 // loop_pre_header
    _
  $region3: #{rnn_forward.1} parent=0 // loop_header
    %s16 = sphi 0, %s20
    %p17 = scmp.ge.s32.totalorder %s16, 4
    %s26 = sphi 0, %s28
    %s29 = sphi 0, %s26
    %s30 = sphi 0, %s29
    %s46 = sphi 0, %s30
    %s50 = sphi 0, %s50
    %s52 = sphi 0, %s50
    %s53 = sphi 0, %s52
    %s67 = sphi 0, %s53
    %s71 = sphi 0, %s71
    %s73 = sphi 0, %s71
    %s74 = sphi 0, %s73
    %s88 = sphi 0, %s74
    %s92 = sphi 0, %s92
    %s94 = sphi 0, %s92
    %s95 = sphi 0, %s94
    %s109 = sphi 0, %s95
    %s113 = sphi 0, %s113
    %s115 = sphi 0, %s113
    %s116 = sphi 0, %s115
    %s130 = sphi 0, %s116
    %s134 = sphi 0, %s134
    %s136 = sphi 0, %s134
    %s137 = sphi 0, %s136
    %s151 = sphi 0, %s137
    %s155 = sphi 0, %s155
    %s157 = sphi 0, %s155
    %s158 = sphi 0, %s157
    %s172 = sphi 0, %s158
    %s178 = sphi 0, %s180
    %s181 = sphi 0, %s178
    %s182 = sphi 0, %s181
    %s198 = sphi 0, %s182
    %s202 = sphi 0, %s202
    %s204 = sphi 0, %s202
    %s205 = sphi 0, %s204
    %s219 = sphi 0, %s205
    %s223 = sphi 0, %s223
    %s225 = sphi 0, %s223
    %s226 = sphi 0, %s225
    %s240 = sphi 0, %s226
  $region4: #{rnn_forward.1} parent=0 // loop_header_branch
    %19 = sbr.rel (%p17) target = $region8
  $region5: #{rnn_forward.1} parent=0 // loop_body
    %s21 = ssub.s32 %s16, 1
    %s22 = ssub.s32 %s16, 2
    %s23 = sadd.s32 %s16, 1
    %s24 = ssub.s32 %s16, %s23
    %p25 = scmp.eq.s32.totalorder %s24, 0
    %s27 = sadd.s32 %s26, 1
    %s28 = scalar_select %p25, %s26, %s27
    %p31 = pneg %p25
    %p32 = scmp.eq.s32.totalorder %s16, 1
    %p33 = por %p31, %p32
    %p34 = scmp.ne.s32.totalorder %s26, %s29
    %p35 = scmp.eq.s32.totalorder %s16, 0
    %p36 = por %p34, %p35
    %p37 = scmp.ne.s32.totalorder %s26, %s29
    %p38 = scmp.eq.s32.totalorder %s21, 1
    %p39 = por %p37, %p38
    %p40 = scmp.ne.s32.totalorder %s29, %s30
    %p41 = scmp.eq.s32.totalorder %s21, 0
    %p42 = por %p40, %p41
    %p43 = scmp.ne.s32.totalorder %s29, %s30
    %p44 = scmp.eq.s32.totalorder %s22, 1
    %p45 = por %p43, %p44
    %p47 = scmp.ne.s32.totalorder %s30, %s46
    %p48 = scmp.eq.s32.totalorder %s22, 0
    %p49 = por %p47, %p48
    %s51 = sadd.s32 %s50, 1
    %p54 = scmp.eq.s32.totalorder %s16, 1
    %p55 = scmp.ne.s32.totalorder %s50, %s52
    %p56 = scmp.eq.s32.totalorder %s16, 0
    %p57 = por %p55, %p56
    %p58 = scmp.ne.s32.totalorder %s50, %s52
    %p59 = scmp.eq.s32.totalorder %s21, 1
    %p60 = por %p58, %p59
    %p61 = scmp.ne.s32.totalorder %s52, %s53
    %p62 = scmp.eq.s32.totalorder %s21, 0
    %p63 = por %p61, %p62
    %p64 = scmp.ne.s32.totalorder %s52, %s53
    %p65 = scmp.eq.s32.totalorder %s22, 1
    %p66 = por %p64, %p65
    %p68 = scmp.ne.s32.totalorder %s53, %s67
    %p69 = scmp.eq.s32.totalorder %s22, 0
    %p70 = por %p68, %p69
    %s72 = sadd.s32 %s71, 1
    %p75 = scmp.eq.s32.totalorder %s16, 1
    %p76 = scmp.ne.s32.totalorder %s71, %s73
    %p77 = scmp.eq.s32.totalorder %s16, 0
    %p78 = por %p76, %p77
    %p79 = scmp.ne.s32.totalorder %s71, %s73
    %p80 = scmp.eq.s32.totalorder %s21, 1
    %p81 = por %p79, %p80
    %p82 = scmp.ne.s32.totalorder %s73, %s74
    %p83 = scmp.eq.s32.totalorder %s21, 0
    %p84 = por %p82, %p83
    %p85 = scmp.ne.s32.totalorder %s73, %s74
    %p86 = scmp.eq.s32.totalorder %s22, 1
    %p87 = por %p85, %p86
    %p89 = scmp.ne.s32.totalorder %s74, %s88
    %p90 = scmp.eq.s32.totalorder %s22, 0
    %p91 = por %p89, %p90
    %s93 = sadd.s32 %s92, 1
    %p96 = scmp.eq.s32.totalorder %s16, 1
    %p97 = scmp.ne.s32.totalorder %s92, %s94
    %p98 = scmp.eq.s32.totalorder %s16, 0
    %p99 = por %p97, %p98
    %p100 = scmp.ne.s32.totalorder %s92, %s94
    %p101 = scmp.eq.s32.totalorder %s21, 1
    %p102 = por %p100, %p101
    %p103 = scmp.ne.s32.totalorder %s94, %s95
    %p104 = scmp.eq.s32.totalorder %s21, 0
    %p105 = por %p103, %p104
    %p106 = scmp.ne.s32.totalorder %s94, %s95
    %p107 = scmp.eq.s32.totalorder %s22, 1
    %p108 = por %p106, %p107
    %p110 = scmp.ne.s32.totalorder %s95, %s109
    %p111 = scmp.eq.s32.totalorder %s22, 0
    %p112 = por %p110, %p111
    %s114 = sadd.s32 %s113, 1
    %p117 = scmp.eq.s32.totalorder %s16, 1
    %p118 = scmp.ne.s32.totalorder %s113, %s115
    %p119 = scmp.eq.s32.totalorder %s16, 0
    %p120 = por %p118, %p119
    %p121 = scmp.ne.s32.totalorder %s113, %s115
    %p122 = scmp.eq.s32.totalorder %s21, 1
    %p123 = por %p121, %p122
    %p124 = scmp.ne.s32.totalorder %s115, %s116
    %p125 = scmp.eq.s32.totalorder %s21, 0
    %p126 = por %p124, %p125
    %p127 = scmp.ne.s32.totalorder %s115, %s116
    %p128 = scmp.eq.s32.totalorder %s22, 1
    %p129 = por %p127, %p128
    %p131 = scmp.ne.s32.totalorder %s116, %s130
    %p132 = scmp.eq.s32.totalorder %s22, 0
    %p133 = por %p131, %p132
    %s135 = sadd.s32 %s134, 1
    %p138 = scmp.eq.s32.totalorder %s16, 1
    %p139 = scmp.ne.s32.totalorder %s134, %s136
    %p140 = scmp.eq.s32.totalorder %s16, 0
    %p141 = por %p139, %p140
    %p142 = scmp.ne.s32.totalorder %s134, %s136
    %p143 = scmp.eq.s32.totalorder %s21, 1
    %p144 = por %p142, %p143
    %p145 = scmp.ne.s32.totalorder %s136, %s137
    %p146 = scmp.eq.s32.totalorder %s21, 0
    %p147 = por %p145, %p146
    %p148 = scmp.ne.s32.totalorder %s136, %s137
    %p149 = scmp.eq.s32.totalorder %s22, 1
    %p150 = por %p148, %p149
    %p152 = scmp.ne.s32.totalorder %s137, %s151
    %p153 = scmp.eq.s32.totalorder %s22, 0
    %p154 = por %p152, %p153
    %s156 = sadd.s32 %s155, 1
    %p159 = scmp.eq.s32.totalorder %s16, 1
    %p160 = scmp.ne.s32.totalorder %s155, %s157
    %p161 = scmp.eq.s32.totalorder %s16, 0
    %p162 = por %p160, %p161
    %p163 = scmp.ne.s32.totalorder %s155, %s157
    %p164 = scmp.eq.s32.totalorder %s21, 1
    %p165 = por %p163, %p164
    %p166 = scmp.ne.s32.totalorder %s157, %s158
    %p167 = scmp.eq.s32.totalorder %s21, 0
    %p168 = por %p166, %p167
    %p169 = scmp.ne.s32.totalorder %s157, %s158
    %p170 = scmp.eq.s32.totalorder %s22, 1
    %p171 = por %p169, %p170
    %p173 = scmp.ne.s32.totalorder %s158, %s172
    %p174 = scmp.eq.s32.totalorder %s22, 0
    %p175 = por %p173, %p174
    %s176 = ssub.s32 %s16, %s23
    %p177 = scmp.eq.s32.totalorder %s176, 0
    %s179 = sadd.s32 %s178, 1
    %s180 = scalar_select %p177, %s178, %s179
    %p183 = pneg %p177
    %p184 = scmp.eq.s32.totalorder %s16, 1
    %p185 = por %p183, %p184
    %p186 = scmp.ne.s32.totalorder %s178, %s181
    %p187 = scmp.eq.s32.totalorder %s16, 0
    %p188 = por %p186, %p187
    %p189 = scmp.ne.s32.totalorder %s178, %s181
    %p190 = scmp.eq.s32.totalorder %s21, 1
    %p191 = por %p189, %p190
    %p192 = scmp.ne.s32.totalorder %s181, %s182
    %p193 = scmp.eq.s32.totalorder %s21, 0
    %p194 = por %p192, %p193
    %p195 = scmp.ne.s32.totalorder %s181, %s182
    %p196 = scmp.eq.s32.totalorder %s22, 1
    %p197 = por %p195, %p196
    %p199 = scmp.ne.s32.totalorder %s182, %s198
    %p200 = scmp.eq.s32.totalorder %s22, 0
    %p201 = por %p199, %p200
    %s203 = sadd.s32 %s202, 1
    %p206 = scmp.eq.s32.totalorder %s16, 1
    %p207 = scmp.ne.s32.totalorder %s202, %s204
    %p208 = scmp.eq.s32.totalorder %s16, 0
    %p209 = por %p207, %p208
    %p210 = scmp.ne.s32.totalorder %s202, %s204
    %p211 = scmp.eq.s32.totalorder %s21, 1
    %p212 = por %p210, %p211
    %p213 = scmp.ne.s32.totalorder %s204, %s205
    %p214 = scmp.eq.s32.totalorder %s21, 0
    %p215 = por %p213, %p214
    %p216 = scmp.ne.s32.totalorder %s204, %s205
    %p217 = scmp.eq.s32.totalorder %s22, 1
    %p218 = por %p216, %p217
    %p220 = scmp.ne.s32.totalorder %s205, %s219
    %p221 = scmp.eq.s32.totalorder %s22, 0
    %p222 = por %p220, %p221
    %s224 = sadd.s32 %s223, 1
    %p227 = scmp.eq.s32.totalorder %s16, 1
    %p228 = scmp.ne.s32.totalorder %s223, %s225
    %p229 = scmp.eq.s32.totalorder %s16, 0
    %p230 = por %p228, %p229
    %p231 = scmp.ne.s32.totalorder %s223, %s225
    %p232 = scmp.eq.s32.totalorder %s21, 1
    %p233 = por %p231, %p232
    %p234 = scmp.ne.s32.totalorder %s225, %s226
    %p235 = scmp.eq.s32.totalorder %s21, 0
    %p236 = por %p234, %p235
    %p237 = scmp.ne.s32.totalorder %s225, %s226
    %p238 = scmp.eq.s32.totalorder %s22, 1
    %p239 = por %p237, %p238
    %p241 = scmp.ne.s32.totalorder %s226, %s240
    %p242 = scmp.eq.s32.totalorder %s22, 0
    %p243 = por %p241, %p242
    %p244 = scmp.le.s32.totalorder 1, %s16
    %p245 = scmp.lt.s32.totalorder %s16, 3
    %p246 = pnand %p244, %p245
    %p247 = pneg %p246
    // Predicated region
    $region9: #{rnn_forward.1} parent=5 // pred_check
      _
    $region10: #{rnn_forward.1} parent=5 // pred_check_branch
      %249 = sbr.rel (%p246) target = $region12
    $region11: #{rnn_forward.1} parent=5 // pred_region
      %s250 = ssub.s32 %s16, 1
      // Predicated region
      $region13: #{rnn_forward.1} parent=11 // pred_check
        %p251 = pneg %p63
      $region14: #{rnn_forward.1} parent=11 // pred_check_branch
        %253 = sbr.rel (%p251) target = $region16
      $region15: #{rnn_forward.1} parent=11 // pred_region
        _
      $region16: #{rnn_forward.1} parent=11 // pred_fallthru
        _
      // Predicated region
      $region17: #{rnn_forward.1} parent=11 // pred_check
        %p254 = pneg %p84
      $region18: #{rnn_forward.1} parent=11 // pred_check_branch
        %256 = sbr.rel (%p254) target = $region20
      $region19: #{rnn_forward.1} parent=11 // pred_region
        _
      $region20: #{rnn_forward.1} parent=11 // pred_fallthru
        _
      // Predicated region
      $region21: #{rnn_forward.1} parent=11 // pred_check
        %p257 = pneg %p105
      $region22: #{rnn_forward.1} parent=11 // pred_check_branch
        %259 = sbr.rel (%p257) target = $region24
      $region23: #{rnn_forward.1} parent=11 // pred_region
        _
      $region24: #{rnn_forward.1} parent=11 // pred_fallthru
        _
      // Predicated region
      $region25: #{rnn_forward.1} parent=11 // pred_check
        %p260 = pneg %p126
      $region26: #{rnn_forward.1} parent=11 // pred_check_branch
        %262 = sbr.rel (%p260) target = $region28
      $region27: #{rnn_forward.1} parent=11 // pred_region
        _
      $region28: #{rnn_forward.1} parent=11 // pred_fallthru
        _
      // Predicated region
      $region29: #{rnn_forward.1} parent=11 // pred_check
        %p263 = pneg %p147
      $region30: #{rnn_forward.1} parent=11 // pred_check_branch
        %265 = sbr.rel (%p263) target = $region32
      $region31: #{rnn_forward.1} parent=11 // pred_region
        _
      $region32: #{rnn_forward.1} parent=11 // pred_fallthru
        _
      // Predicated region
      $region33: #{rnn_forward.1} parent=11 // pred_check
        %p266 = pneg %p168
      $region34: #{rnn_forward.1} parent=11 // pred_check_branch
        %268 = sbr.rel (%p266) target = $region36
      $region35: #{rnn_forward.1} parent=11 // pred_region
        _
      $region36: #{rnn_forward.1} parent=11 // pred_fallthru
        _
    $region12: #{rnn_forward.1} parent=5 // pred_fallthru
      _
    %p269 = scmp.lt.s32.totalorder %s16, 2
    // Predicated region
    $region37: #{rnn_forward.1} parent=5 // pred_check
      %p270 = pneg %p269
    $region38: #{rnn_forward.1} parent=5 // pred_check_branch
      %272 = sbr.rel (%p270) target = $region40
    $region39: #{rnn_forward.1} parent=5 // pred_region
      // Predicated region
      $region41: #{rnn_forward.1} parent=39 // pred_check
        %p273 = pneg %p36
      $region42: #{rnn_forward.1} parent=39 // pred_check_branch
        %275 = sbr.rel (%p273) target = $region44
      $region43: #{rnn_forward.1} parent=39 // pred_region
        %s276 = smul.u32 4, %s16
        %p277 = scmp.lt.s32.totalorder %s276, 7
        %s278 = scalar_select %p277, %s276, 7
        %s279 = smul.addr %s278, 8
        %s280 = scalar_lea.vmem %s0, %s279
        %s281 = smul.u32 4, %s16
      $region44: #{rnn_forward.1} parent=39 // pred_fallthru
        _
    $region40: #{rnn_forward.1} parent=5 // pred_fallthru
      _
    %p282 = scmp.le.s32.totalorder 1, %s16
    %p283 = scmp.lt.s32.totalorder %s16, 3
    %p284 = pnand %p282, %p283
    %p285 = pneg %p284
    // Predicated region
    $region45: #{rnn_forward.1} parent=5 // pred_check
      _
    $region46: #{rnn_forward.1} parent=5 // pred_check_branch
      %287 = sbr.rel (%p284) target = $region48
    $region47: #{rnn_forward.1} parent=5 // pred_region
      %s288 = ssub.s32 %s16, 1
      %s289 = smul.u32 4, %s21
      %p290 = scmp.lt.s32.totalorder %s289, 7
      %s291 = scalar_select %p290, %s289, 7
      %s292 = smul.addr %s291, 8
      %s293 = scalar_lea.vmem %s0, %s292
      %p294 = pneg %p42
      %p295 = pneg %p39
      %p296 = pneg %p63
      %p297 = pneg %p60
      %p298 = pneg %p84
      %p299 = pneg %p81
      %p300 = pneg %p105
      %p301 = pneg %p102
      %p302 = pneg %p126
      %p303 = pneg %p123
      %p304 = pneg %p147
      %p305 = pneg %p144
      %p306 = pneg %p168
      %p307 = pneg %p165
      %p308 = pneg %p194
      %p309 = pneg %p191
      %s310 = smul.u32 4, %s21
      %p311 = scmp.lt.s32.totalorder %s310, 7
      %s312 = scalar_select %p311, %s310, 7
      %s313 = smul.addr %s312, 8
      %s314 = scalar_lea.vmem %s7, %s313
      %p315 = pneg %p215
      %p316 = pneg %p212
      %p317 = pneg %p236
      %p318 = pneg %p233
      %s319 = smul.u32 4, %s21
      %p320 = scmp.lt.s32.totalorder %s319, 7
      %s321 = scalar_select %p320, %s319, 7
      %s322 = smul.addr %s321, 8
      %s323 = scalar_lea.vmem %s0, %s322
      %s324 = smul.u32 4, %s21
      %s325 = smul.u32 4, %s21
      %p326 = scmp.lt.s32.totalorder %s325, 7
      %s327 = scalar_select %p326, %s325, 7
      %s328 = smul.addr %s327, 8
      %s329 = scalar_lea.vmem %s7, %s328
      %s330 = smul.u32 4, %s21
      %p331 = scmp.eq.s32.totalorder %s21, 0
      // Predicated region
      $region49: #{rnn_forward.1} parent=47 // pred_check
        %p332 = pneg %p331
      $region50: #{rnn_forward.1} parent=47 // pred_check_branch
        %334 = sbr.rel (%p332) target = $region52
      $region51: #{rnn_forward.1} parent=47 // pred_region
        %v335 = vld [vmem:[%s1] sm:$0xff]
        %v336 = vld [vmem:[%s1 + $0x8] sm:$0xff]
        %vm337 = vcmask 261120
        %338 = vst.msk [vmem:[#allocation2] sm:$0xff] %vm337, %v335
        %339 = vst.msk [vmem:[#allocation2 + $0x8] sm:$0xff] %vm337, %v336
        %v340 = vld [vmem:[%s2] sm:$0xff]
        %v341 = vld [vmem:[%s2 + $0x8] sm:$0xff]
        %342 = vst.msk [vmem:[#allocation3] sm:$0xff] %vm337, %v340
        %343 = vst.msk [vmem:[#allocation3 + $0x8] sm:$0xff] %vm337, %v341
      $region52: #{rnn_forward.1} parent=47 // pred_fallthru
        _
      %v344 = vld [vmem:[#allocation2] sm:$0xff]
      %v345 = vld [vmem:[#allocation3] sm:$0xff]
      %v346 = vld [vmem:[%s323] sm:$0xff]
      %v347 = vld [vmem:[%s3] sm:$0xff]
      %v348 = vld [vmem:[%s3 + $0x8] sm:$0xff]
      %v349 = vld [vmem:[%s3 + $0x10] sm:$0xff]
      %v350 = vld [vmem:[%s3 + $0x18] sm:$0xff]
      %vm351 = vcmask 261120
      %v353 = vsel %vm351, %v344, 0
      %355 = vmatprep.subr.mxu0 0.0
      %356 = vmatpush1.msra.mxu0 %v347
      %357 = vmatprep.subr.mxu0 0.0
      %358 = vmatpush1.msra.mxu0 %v348
      %359 = vmatprep.subr.mxu0 0.0
      %360 = vmatpush1.msra.mxu0 %v349
      %361 = vmatprep.subr.mxu0 0.0
      %362 = vmatpush1.msra.mxu0 %v350
      %363 = vmatprep.subr.mxu0 0.0
      %364 = vmatpush1.msra.mxu0 0.0
      %365 = vmatprep.subr.mxu0 0.0
      %366 = vmatpush1.msra.mxu0 0.0
      %367 = vmatprep.subr.mxu0 0.0
      %368 = vmatpush1.msra.mxu0 0.0
      %369 = vmatprep.subr.mxu0 0.0
      %370 = vmatpush1.msra.mxu0 0.0
      %371 = vmatprep.subr.mxu0 0.0
      %372 = vmatpush1.msra.mxu0 0.0
      %373 = vmatprep.subr.mxu0 0.0
      %374 = vmatpush1.msra.mxu0 0.0
      %375 = vmatprep.subr.mxu0 0.0
      %376 = vmatpush1.msra.mxu0 0.0
      %377 = vmatprep.subr.mxu0 0.0
      %378 = vmatpush1.msra.mxu0 0.0
      %379 = vmatprep.subr.mxu0 0.0
      %380 = vmatpush1.msra.mxu0 0.0
      %381 = vmatprep.subr.mxu0 0.0
      %382 = vmatpush1.msra.mxu0 0.0
      %383 = vmatprep.subr.mxu0 0.0
      %384 = vmatpush1.msra.mxu0 0.0
      %385 = vmatprep.subr.mxu0 0.0
      %386 = vmatpush1.msra.mxu0 0.0
      %387 = vmatprep.subr.mxu0 0.0
      %388 = vmatpush1.msra.mxu0 0.0
      %389 = vmatprep.subr.mxu0 0.0
      %390 = vmatpush1.msra.mxu0 0.0
      %391 = vmatprep.subr.mxu0 0.0
      %392 = vmatpush1.msra.mxu0 0.0
      %393 = vmatprep.subr.mxu0 0.0
      %394 = vmatpush1.msra.mxu0 0.0
      %395 = vmatprep.subr.mxu0 0.0
      %396 = vmatpush1.msra.mxu0 0.0
      %397 = vmatprep.subr.mxu0 0.0
      %398 = vmatpush1.msra.mxu0 0.0
      %399 = vmatprep.subr.mxu0 0.0
      %400 = vmatpush1.msra.mxu0 0.0
      %401 = vmatprep.subr.mxu0 0.0
      %402 = vmatpush1.msra.mxu0 0.0
      %403 = vmatprep.subr.mxu0 0.0
      %404 = vmatpush1.msra.mxu0 0.0
      %405 = vmatprep.subr.mxu0 0.0
      %406 = vmatpush1.msra.mxu0 0.0
      %407 = vmatprep.subr.mxu0 0.0
      %408 = vmatpush1.msra.mxu0 0.0
      %409 = vmatprep.subr.mxu0 0.0
      %410 = vmatpush1.msra.mxu0 0.0
      %411 = vmatprep.subr.mxu0 0.0
      %412 = vmatpush1.msra.mxu0 0.0
      %413 = vmatprep.subr.mxu0 0.0
      %414 = vmatpush1.msra.mxu0 0.0
      %415 = vmatprep.subr.mxu0 0.0
      %416 = vmatpush1.msra.mxu0 0.0
      %417 = vmatprep.subr.mxu0 0.0
      %418 = vmatpush1.msra.mxu0 0.0
      %419 = vmatprep.mubr.f32.mxu0 0.0
      %420 = vmatmul.mubr.f32.gmra.mrb[0].mxu0 %v353
      %v421 = vpop.f32.mrb[0].mxu0
      %v422 = vadd.f32 0.0, %v421
      %v423 = vpop.f32.mrb[0].mxu0
      %424 = vdwg.mxu0
      %v425 = vadd.f32 %v346, %v422
      %v426 = vxor.u32 %v425, 2147483648
      %v427 = vmul.f32 %v426, 1.442695
      %v428 = vpow.pop %v427
      %v429 = vadd.f32 %v428, 1.0
      %v430 = vrcp.pop %v429
      %v431 = vmul.f32 1.0, %v430
      %v432 = vtanh.pop %v425
      %434 = vrot.lane.b32.xlu0 %v345, 32
      %v435 = vpop.permute.xlu0 %434
      %v437 = vmul.f32 %v431, %v435
      %439 = vrot.lane.b32.xlu0 %v432, 64
      %v440 = vpop.permute.xlu0 %439
      %v442 = vmul.f32 %v431, %v440
      %444 = vrot.lane.b32.xlu0 %v442, 32
      %v445 = vpop.permute.xlu0 %444
      %v447 = vadd.f32 %v437, %v445
      %v448 = vtanh.pop %v447
      %450 = vrot.lane.b32.xlu0 %v448, 64
      %v451 = vpop.permute.xlu0 %450
      %v453 = vmul.f32 %v431, %v451
      %455 = vrot.lane.b32.xlu0 %v453, 32
      %v456 = vpop.permute.xlu0 %455
      %458 = vst.msk [vmem:[#allocation2] sm:$0xff] %vm351, %v456
      %460 = vrot.lane.b32.xlu0 %v447, 96
      %v461 = vpop.permute.xlu0 %460
      %463 = vst.msk [vmem:[#allocation3] sm:$0xff] %vm351, %v461
      %s464 = scalar_lea.vmem [#allocation2], 8
      %v465 = vld [vmem:[%s464] sm:$0xff]
      %s466 = scalar_lea.vmem [#allocation3], 8
      %v467 = vld [vmem:[%s466] sm:$0xff]
      %v468 = vld [vmem:[%s4] sm:$0xff]
      %v469 = vld [vmem:[%s4 + $0x8] sm:$0xff]
      %v470 = vld [vmem:[%s4 + $0x10] sm:$0xff]
      %v471 = vld [vmem:[%s4 + $0x18] sm:$0xff]
      %v472 = vld [vmem:[%s5] sm:$0xff]
      %v473 = vld [vmem:[%s5 + $0x8] sm:$0xff]
      %v474 = vld [vmem:[%s5 + $0x10] sm:$0xff]
      %v475 = vld [vmem:[%s5 + $0x18] sm:$0xff]
      %v477 = vsel %vm351, %v465, 0
      %479 = vmatprep.subr.mxu0 0.0
      %480 = vmatpush1.msra.mxu0 %v472
      %481 = vmatprep.subr.mxu0 0.0
      %482 = vmatpush1.msra.mxu0 %v473
      %483 = vmatprep.subr.mxu0 0.0
      %484 = vmatpush1.msra.mxu0 %v474
      %485 = vmatprep.subr.mxu0 0.0
      %486 = vmatpush1.msra.mxu0 %v475
      %487 = vmatprep.subr.mxu0 0.0
      %488 = vmatpush1.msra.mxu0 0.0
      %489 = vmatprep.subr.mxu0 0.0
      %490 = vmatpush1.msra.mxu0 0.0
      %491 = vmatprep.subr.mxu0 0.0
      %492 = vmatpush1.msra.mxu0 0.0
      %493 = vmatprep.subr.mxu0 0.0
      %494 = vmatpush1.msra.mxu0 0.0
      %495 = vmatprep.subr.mxu0 0.0
      %496 = vmatpush1.msra.mxu0 0.0
      %497 = vmatprep.subr.mxu0 0.0
      %498 = vmatpush1.msra.mxu0 0.0
      %499 = vmatprep.subr.mxu0 0.0
      %500 = vmatpush1.msra.mxu0 0.0
      %501 = vmatprep.subr.mxu0 0.0
      %502 = vmatpush1.msra.mxu0 0.0
      %503 = vmatprep.subr.mxu0 0.0
      %504 = vmatpush1.msra.mxu0 0.0
      %505 = vmatprep.subr.mxu0 0.0
      %506 = vmatpush1.msra.mxu0 0.0
      %507 = vmatprep.subr.mxu0 0.0
      %508 = vmatpush1.msra.mxu0 0.0
      %509 = vmatprep.subr.mxu0 0.0
      %510 = vmatpush1.msra.mxu0 0.0
      %511 = vmatprep.subr.mxu0 0.0
      %512 = vmatpush1.msra.mxu0 0.0
      %513 = vmatprep.subr.mxu0 0.0
      %514 = vmatpush1.msra.mxu0 0.0
      %515 = vmatprep.subr.mxu0 0.0
      %516 = vmatpush1.msra.mxu0 0.0
      %517 = vmatprep.subr.mxu0 0.0
      %518 = vmatpush1.msra.mxu0 0.0
      %519 = vmatprep.subr.mxu0 0.0
      %520 = vmatpush1.msra.mxu0 0.0
      %521 = vmatprep.subr.mxu0 0.0
      %522 = vmatpush1.msra.mxu0 0.0
      %523 = vmatprep.subr.mxu0 0.0
      %524 = vmatpush1.msra.mxu0 0.0
      %525 = vmatprep.subr.mxu0 0.0
      %526 = vmatpush1.msra.mxu0 0.0
      %527 = vmatprep.subr.mxu0 0.0
      %528 = vmatpush1.msra.mxu0 0.0
      %529 = vmatprep.subr.mxu0 0.0
      %530 = vmatpush1.msra.mxu0 0.0
      %531 = vmatprep.subr.mxu0 0.0
      %532 = vmatpush1.msra.mxu0 0.0
      %533 = vmatprep.subr.mxu0 0.0
      %534 = vmatpush1.msra.mxu0 0.0
      %535 = vmatprep.subr.mxu0 0.0
      %536 = vmatpush1.msra.mxu0 0.0
      %537 = vmatprep.subr.mxu0 0.0
      %538 = vmatpush1.msra.mxu0 0.0
      %539 = vmatprep.subr.mxu0 0.0
      %540 = vmatpush1.msra.mxu0 0.0
      %541 = vmatprep.subr.mxu0 0.0
      %542 = vmatpush1.msra.mxu0 0.0
      %543 = vmatprep.mubr.f32.mxu0 0.0
      %544 = vmatmul.mubr.f32.gmra.mrb[0].mxu0 %v477
      %v545 = vpop.f32.mrb[0].mxu0
      %v546 = vadd.f32 0.0, %v545
      %v547 = vpop.f32.mrb[0].mxu0
      %548 = vdwg.mxu0
      %v549 = vsel %vm351, %v456, 0
      %551 = vmatprep.subr.mxu0 0.0
      %552 = vmatpush1.msra.mxu0 %v468
      %553 = vmatprep.subr.mxu0 0.0
      %554 = vmatpush1.msra.mxu0 %v469
      %555 = vmatprep.subr.mxu0 0.0
      %556 = vmatpush1.msra.mxu0 %v470
      %557 = vmatprep.subr.mxu0 0.0
      %558 = vmatpush1.msra.mxu0 %v471
      %559 = vmatprep.subr.mxu0 0.0
      %560 = vmatpush1.msra.mxu0 0.0
      %561 = vmatprep.subr.mxu0 0.0
      %562 = vmatpush1.msra.mxu0 0.0
      %563 = vmatprep.subr.mxu0 0.0
      %564 = vmatpush1.msra.mxu0 0.0
      %565 = vmatprep.subr.mxu0 0.0
      %566 = vmatpush1.msra.mxu0 0.0
      %567 = vmatprep.subr.mxu0 0.0
      %568 = vmatpush1.msra.mxu0 0.0
      %569 = vmatprep.subr.mxu0 0.0
      %570 = vmatpush1.msra.mxu0 0.0
      %571 = vmatprep.subr.mxu0 0.0
      %572 = vmatpush1.msra.mxu0 0.0
      %573 = vmatprep.subr.mxu0 0.0
      %574 = vmatpush1.msra.mxu0 0.0
      %575 = vmatprep.subr.mxu0 0.0
      %576 = vmatpush1.msra.mxu0 0.0
      %577 = vmatprep.subr.mxu0 0.0
      %578 = vmatpush1.msra.mxu0 0.0
      %579 = vmatprep.subr.mxu0 0.0
      %580 = vmatpush1.msra.mxu0 0.0
      %581 = vmatprep.subr.mxu0 0.0
      %582 = vmatpush1.msra.mxu0 0.0
      %583 = vmatprep.subr.mxu0 0.0
      %584 = vmatpush1.msra.mxu0 0.0
      %585 = vmatprep.subr.mxu0 0.0
      %586 = vmatpush1.msra.mxu0 0.0
      %587 = vmatprep.subr.mxu0 0.0
      %588 = vmatpush1.msra.mxu0 0.0
      %589 = vmatprep.subr.mxu0 0.0
      %590 = vmatpush1.msra.mxu0 0.0
      %591 = vmatprep.subr.mxu0 0.0
      %592 = vmatpush1.msra.mxu0 0.0
      %593 = vmatprep.subr.mxu0 0.0
      %594 = vmatpush1.msra.mxu0 0.0
      %595 = vmatprep.subr.mxu0 0.0
      %596 = vmatpush1.msra.mxu0 0.0
      %597 = vmatprep.subr.mxu0 0.0
      %598 = vmatpush1.msra.mxu0 0.0
      %599 = vmatprep.subr.mxu0 0.0
      %600 = vmatpush1.msra.mxu0 0.0
      %601 = vmatprep.subr.mxu0 0.0
      %602 = vmatpush1.msra.mxu0 0.0
      %603 = vmatprep.subr.mxu0 0.0
      %604 = vmatpush1.msra.mxu0 0.0
      %605 = vmatprep.subr.mxu0 0.0
      %606 = vmatpush1.msra.mxu0 0.0
      %607 = vmatprep.subr.mxu0 0.0
      %608 = vmatpush1.msra.mxu0 0.0
      %609 = vmatprep.subr.mxu0 0.0
      %610 = vmatpush1.msra.mxu0 0.0
      %611 = vmatprep.subr.mxu0 0.0
      %612 = vmatpush1.msra.mxu0 0.0
      %613 = vmatprep.subr.mxu0 0.0
      %614 = vmatpush1.msra.mxu0 0.0
      %615 = vmatprep.mubr.f32.mxu0 0.0
      %616 = vmatmul.mubr.f32.gmra.mrb[0].mxu0 %v549
      %v617 = vpop.f32.mrb[0].mxu0
      %v618 = vadd.f32 %v546, %v617
      %v619 = vpop.f32.mrb[0].mxu0
      %620 = vdwg.mxu0
      %v621 = vld [vmem:[%s6] sm:$0x1]
      %v623 = vlaneseq
      %v624 = vshrl.u32 %v623, 7
      %v625 = vsub.s32 0, %v624
      %v626 = vrot.slane %v621, %v625
      %v628 = vadd.f32 %v618, %v626
      %v629 = vxor.u32 %v628, 2147483648
      %v630 = vmul.f32 %v629, 1.442695
      %v631 = vpow.pop %v630
      %v632 = vadd.f32 %v631, 1.0
      %v633 = vrcp.pop %v632
      %v634 = vmul.f32 1.0, %v633
      %v635 = vtanh.pop %v628
      %637 = vrot.lane.b32.xlu0 %v467, 32
      %v638 = vpop.permute.xlu0 %637
      %v640 = vmul.f32 %v634, %v638
      %642 = vrot.lane.b32.xlu0 %v635, 64
      %v643 = vpop.permute.xlu0 %642
      %v645 = vmul.f32 %v634, %v643
      %647 = vrot.lane.b32.xlu0 %v645, 32
      %v648 = vpop.permute.xlu0 %647
      %v650 = vadd.f32 %v640, %v648
      %v651 = vtanh.pop %v650
      %653 = vrot.lane.b32.xlu0 %v651, 64
      %v654 = vpop.permute.xlu0 %653
      %v656 = vmul.f32 %v634, %v654
      %658 = vrot.lane.b32.xlu0 %v656, 32
      %v659 = vpop.permute.xlu0 %658
      %661 = vst.msk [vmem:[%s464] sm:$0xff] %vm351, %v659
      %663 = vrot.lane.b32.xlu0 %v650, 96
      %v664 = vpop.permute.xlu0 %663
      %666 = vst.msk [vmem:[%s466] sm:$0xff] %vm351, %v664
      %667 = vst.msk [vmem:[%s329] sm:$0xff] %vm351, %v659
      %v668 = vld [vmem:[#allocation2] sm:$0xff]
      %v669 = vld [vmem:[#allocation3] sm:$0xff]
      %s670 = scalar_lea.vmem %s323, 8
      %v671 = vld [vmem:[%s670] sm:$0xff]
      %v672 = vld [vmem:[%s3] sm:$0xff]
      %v673 = vld [vmem:[%s3 + $0x8] sm:$0xff]
      %v674 = vld [vmem:[%s3 + $0x10] sm:$0xff]
      %v675 = vld [vmem:[%s3 + $0x18] sm:$0xff]
      %v677 = vsel %vm351, %v668, 0
      %679 = vmatprep.subr.mxu0 0.0
      %680 = vmatpush1.msra.mxu0 %v672
      %681 = vmatprep.subr.mxu0 0.0
      %682 = vmatpush1.msra.mxu0 %v673
      %683 = vmatprep.subr.mxu0 0.0
      %684 = vmatpush1.msra.mxu0 %v674
      %685 = vmatprep.subr.mxu0 0.0
      %686 = vmatpush1.msra.mxu0 %v675
      %687 = vmatprep.subr.mxu0 0.0
      %688 = vmatpush1.msra.mxu0 0.0
      %689 = vmatprep.subr.mxu0 0.0
      %690 = vmatpush1.msra.mxu0 0.0
      %691 = vmatprep.subr.mxu0 0.0
      %692 = vmatpush1.msra.mxu0 0.0
      %693 = vmatprep.subr.mxu0 0.0
      %694 = vmatpush1.msra.mxu0 0.0
      %695 = vmatprep.subr.mxu0 0.0
      %696 = vmatpush1.msra.mxu0 0.0
      %697 = vmatprep.subr.mxu0 0.0
      %698 = vmatpush1.msra.mxu0 0.0
      %699 = vmatprep.subr.mxu0 0.0
      %700 = vmatpush1.msra.mxu0 0.0
      %701 = vmatprep.subr.mxu0 0.0
      %702 = vmatpush1.msra.mxu0 0.0
      %703 = vmatprep.subr.mxu0 0.0
      %704 = vmatpush1.msra.mxu0 0.0
      %705 = vmatprep.subr.mxu0 0.0
      %706 = vmatpush1.msra.mxu0 0.0
      %707 = vmatprep.subr.mxu0 0.0
      %708 = vmatpush1.msra.mxu0 0.0
      %709 = vmatprep.subr.mxu0 0.0
      %710 = vmatpush1.msra.mxu0 0.0
      %711 = vmatprep.subr.mxu0 0.0
      %712 = vmatpush1.msra.mxu0 0.0
      %713 = vmatprep.subr.mxu0 0.0
      %714 = vmatpush1.msra.mxu0 0.0
      %715 = vmatprep.subr.mxu0 0.0
      %716 = vmatpush1.msra.mxu0 0.0
      %717 = vmatprep.subr.mxu0 0.0
      %718 = vmatpush1.msra.mxu0 0.0
      %719 = vmatprep.subr.mxu0 0.0
      %720 = vmatpush1.msra.mxu0 0.0
      %721 = vmatprep.subr.mxu0 0.0
      %722 = vmatpush1.msra.mxu0 0.0
      %723 = vmatprep.subr.mxu0 0.0
      %724 = vmatpush1.msra.mxu0 0.0
      %725 = vmatprep.subr.mxu0 0.0
      %726 = vmatpush1.msra.mxu0 0.0
      %727 = vmatprep.subr.mxu0 0.0
      %728 = vmatpush1.msra.mxu0 0.0
      %729 = vmatprep.subr.mxu0 0.0
      %730 = vmatpush1.msra.mxu0 0.0
      %731 = vmatprep.subr.mxu0 0.0
      %732 = vmatpush1.msra.mxu0 0.0
      %733 = vmatprep.subr.mxu0 0.0
      %734 = vmatpush1.msra.mxu0 0.0
      %735 = vmatprep.subr.mxu0 0.0
      %736 = vmatpush1.msra.mxu0 0.0
      %737 = vmatprep.subr.mxu0 0.0
      %738 = vmatpush1.msra.mxu0 0.0
      %739 = vmatprep.subr.mxu0 0.0
      %740 = vmatpush1.msra.mxu0 0.0
      %741 = vmatprep.subr.mxu0 0.0
      %742 = vmatpush1.msra.mxu0 0.0
      %743 = vmatprep.mubr.f32.mxu0 0.0
      %744 = vmatmul.mubr.f32.gmra.mrb[0].mxu0 %v677
      %v745 = vpop.f32.mrb[0].mxu0
      %v746 = vadd.f32 0.0, %v745
      %v747 = vpop.f32.mrb[0].mxu0
      %748 = vdwg.mxu0
      %v749 = vadd.f32 %v671, %v746
      %v750 = vxor.u32 %v749, 2147483648
      %v751 = vmul.f32 %v750, 1.442695
      %v752 = vpow.pop %v751
      %v753 = vadd.f32 %v752, 1.0
      %v754 = vrcp.pop %v753
      %v755 = vmul.f32 1.0, %v754
      %v756 = vtanh.pop %v749
      %758 = vrot.lane.b32.xlu0 %v669, 32
      %v759 = vpop.permute.xlu0 %758
      %v761 = vmul.f32 %v755, %v759
      %763 = vrot.lane.b32.xlu0 %v756, 64
      %v764 = vpop.permute.xlu0 %763
      %v766 = vmul.f32 %v755, %v764
      %768 = vrot.lane.b32.xlu0 %v766, 32
      %v769 = vpop.permute.xlu0 %768
      %v771 = vadd.f32 %v761, %v769
      %v772 = vtanh.pop %v771
      %774 = vrot.lane.b32.xlu0 %v772, 64
      %v775 = vpop.permute.xlu0 %774
      %v777 = vmul.f32 %v755, %v775
      %779 = vrot.lane.b32.xlu0 %v777, 32
      %v780 = vpop.permute.xlu0 %779
      %782 = vst.msk [vmem:[#allocation2] sm:$0xff] %vm351, %v780
      %784 = vrot.lane.b32.xlu0 %v771, 96
      %v785 = vpop.permute.xlu0 %784
      %787 = vst.msk [vmem:[#allocation3] sm:$0xff] %vm351, %v785
      %v788 = vld [vmem:[%s464] sm:$0xff]
      %v789 = vld [vmem:[%s466] sm:$0xff]
      %v790 = vld [vmem:[%s4] sm:$0xff]
      %v791 = vld [vmem:[%s4 + $0x8] sm:$0xff]
      %v792 = vld [vmem:[%s4 + $0x10] sm:$0xff]
      %v793 = vld [vmem:[%s4 + $0x18] sm:$0xff]
      %v794 = vld [vmem:[%s5] sm:$0xff]
      %v795 = vld [vmem:[%s5 + $0x8] sm:$0xff]
      %v796 = vld [vmem:[%s5 + $0x10] sm:$0xff]
      %v797 = vld [vmem:[%s5 + $0x18] sm:$0xff]
      %v799 = vsel %vm351, %v788, 0
      %801 = vmatprep.subr.mxu0 0.0
      %802 = vmatpush1.msra.mxu0 %v794
      %803 = vmatprep.subr.mxu0 0.0
      %804 = vmatpush1.msra.mxu0 %v795
      %805 = vmatprep.subr.mxu0 0.0
      %806 = vmatpush1.msra.mxu0 %v796
      %807 = vmatprep.subr.mxu0 0.0
      %808 = vmatpush1.msra.mxu0 %v797
      %809 = vmatprep.subr.mxu0 0.0
      %810 = vmatpush1.msra.mxu0 0.0
      %811 = vmatprep.subr.mxu0 0.0
      %812 = vmatpush1.msra.mxu0 0.0
      %813 = vmatprep.subr.mxu0 0.0
      %814 = vmatpush1.msra.mxu0 0.0
      %815 = vmatprep.subr.mxu0 0.0
      %816 = vmatpush1.msra.mxu0 0.0
      %817 = vmatprep.subr.mxu0 0.0
      %818 = vmatpush1.msra.mxu0 0.0
      %819 = vmatprep.subr.mxu0 0.0
      %820 = vmatpush1.msra.mxu0 0.0
      %821 = vmatprep.subr.mxu0 0.0
      %822 = vmatpush1.msra.mxu0 0.0
      %823 = vmatprep.subr.mxu0 0.0
      %824 = vmatpush1.msra.mxu0 0.0
      %825 = vmatprep.subr.mxu0 0.0
      %826 = vmatpush1.msra.mxu0 0.0
      %827 = vmatprep.subr.mxu0 0.0
      %828 = vmatpush1.msra.mxu0 0.0
      %829 = vmatprep.subr.mxu0 0.0
      %830 = vmatpush1.msra.mxu0 0.0
      %831 = vmatprep.subr.mxu0 0.0
      %832 = vmatpush1.msra.mxu0 0.0
      %833 = vmatprep.subr.mxu0 0.0
      %834 = vmatpush1.msra.mxu0 0.0
      %835 = vmatprep.subr.mxu0 0.0
      %836 = vmatpush1.msra.mxu0 0.0
      %837 = vmatprep.subr.mxu0 0.0
      %838 = vmatpush1.msra.mxu0 0.0
      %839 = vmatprep.subr.mxu0 0.0
      %840 = vmatpush1.msra.mxu0 0.0
      %841 = vmatprep.subr.mxu0 0.0
      %842 = vmatpush1.msra.mxu0 0.0
      %843 = vmatprep.subr.mxu0 0.0
      %844 = vmatpush1.msra.mxu0 0.0
      %845 = vmatprep.subr.mxu0 0.0
      %846 = vmatpush1.msra.mxu0 0.0
      %847 = vmatprep.subr.mxu0 0.0
      %848 = vmatpush1.msra.mxu0 0.0
      %849 = vmatprep.subr.mxu0 0.0
      %850 = vmatpush1.msra.mxu0 0.0
      %851 = vmatprep.subr.mxu0 0.0
      %852 = vmatpush1.msra.mxu0 0.0
      %853 = vmatprep.subr.mxu0 0.0
      %854 = vmatpush1.msra.mxu0 0.0
      %855 = vmatprep.subr.mxu0 0.0
      %856 = vmatpush1.msra.mxu0 0.0
      %857 = vmatprep.subr.mxu0 0.0
      %858 = vmatpush1.msra.mxu0 0.0
      %859 = vmatprep.subr.mxu0 0.0
      %860 = vmatpush1.msra.mxu0 0.0
      %861 = vmatprep.subr.mxu0 0.0
      %862 = vmatpush1.msra.mxu0 0.0
      %863 = vmatprep.subr.mxu0 0.0
      %864 = vmatpush1.msra.mxu0 0.0
      %865 = vmatprep.mubr.f32.mxu0 0.0
      %866 = vmatmul.mubr.f32.gmra.mrb[0].mxu0 %v799
      %v867 = vpop.f32.mrb[0].mxu0
      %v868 = vadd.f32 0.0, %v867
      %v869 = vpop.f32.mrb[0].mxu0
      %870 = vdwg.mxu0
      %v871 = vsel %vm351, %v780, 0
      %873 = vmatprep.subr.mxu0 0.0
      %874 = vmatpush1.msra.mxu0 %v790
      %875 = vmatprep.subr.mxu0 0.0
      %876 = vmatpush1.msra.mxu0 %v791
      %877 = vmatprep.subr.mxu0 0.0
      %878 = vmatpush1.msra.mxu0 %v792
      %879 = vmatprep.subr.mxu0 0.0
      %880 = vmatpush1.msra.mxu0 %v793
      %881 = vmatprep.subr.mxu0 0.0
      %882 = vmatpush1.msra.mxu0 0.0
      %883 = vmatprep.subr.mxu0 0.0
      %884 = vmatpush1.msra.mxu0 0.0
      %885 = vmatprep.subr.mxu0 0.0
      %886 = vmatpush1.msra.mxu0 0.0
      %887 = vmatprep.subr.mxu0 0.0
      %888 = vmatpush1.msra.mxu0 0.0
      %889 = vmatprep.subr.mxu0 0.0
      %890 = vmatpush1.msra.mxu0 0.0
      %891 = vmatprep.subr.mxu0 0.0
      %892 = vmatpush1.msra.mxu0 0.0
      %893 = vmatprep.subr.mxu0 0.0
      %894 = vmatpush1.msra.mxu0 0.0
      %895 = vmatprep.subr.mxu0 0.0
      %896 = vmatpush1.msra.mxu0 0.0
      %897 = vmatprep.subr.mxu0 0.0
      %898 = vmatpush1.msra.mxu0 0.0
      %899 = vmatprep.subr.mxu0 0.0
      %900 = vmatpush1.msra.mxu0 0.0
      %901 = vmatprep.subr.mxu0 0.0
      %902 = vmatpush1.msra.mxu0 0.0
      %903 = vmatprep.subr.mxu0 0.0
      %904 = vmatpush1.msra.mxu0 0.0
      %905 = vmatprep.subr.mxu0 0.0
      %906 = vmatpush1.msra.mxu0 0.0
      %907 = vmatprep.subr.mxu0 0.0
      %908 = vmatpush1.msra.mxu0 0.0
      %909 = vmatprep.subr.mxu0 0.0
      %910 = vmatpush1.msra.mxu0 0.0
      %911 = vmatprep.subr.mxu0 0.0
      %912 = vmatpush1.msra.mxu0 0.0
      %913 = vmatprep.subr.mxu0 0.0
      %914 = vmatpush1.msra.mxu0 0.0
      %915 = vmatprep.subr.mxu0 0.0
      %916 = vmatpush1.msra.mxu0 0.0
      %917 = vmatprep.subr.mxu0 0.0
      %918 = vmatpush1.msra.mxu0 0.0
      %919 = vmatprep.subr.mxu0 0.0
      %920 = vmatpush1.msra.mxu0 0.0
      %921 = vmatprep.subr.mxu0 0.0
      %922 = vmatpush1.msra.mxu0 0.0
      %923 = vmatprep.subr.mxu0 0.0
      %924 = vmatpush1.msra.mxu0 0.0
      %925 = vmatprep.subr.mxu0 0.0
      %926 = vmatpush1.msra.mxu0 0.0
      %927 = vmatprep.subr.mxu0 0.0
      %928 = vmatpush1.msra.mxu0 0.0
      %929 = vmatprep.subr.mxu0 0.0
      %930 = vmatpush1.msra.mxu0 0.0
      %931 = vmatprep.subr.mxu0 0.0
      %932 = vmatpush1.msra.mxu0 0.0
      %933 = vmatprep.subr.mxu0 0.0
      %934 = vmatpush1.msra.mxu0 0.0
      %935 = vmatprep.subr.mxu0 0.0
      %936 = vmatpush1.msra.mxu0 0.0
      %937 = vmatprep.mubr.f32.mxu0 0.0
      %938 = vmatmul.mubr.f32.gmra.mrb[0].mxu0 %v871
      %v939 = vpop.f32.mrb[0].mxu0
      %v940 = vadd.f32 %v868, %v939
      %v941 = vpop.f32.mrb[0].mxu0
      %942 = vdwg.mxu0
      %v943 = vld [vmem:[%s6] sm:$0x1]
      %v945 = vlaneseq
      %v946 = vshrl.u32 %v945, 7
      %v947 = vsub.s32 0, %v946
      %v948 = vrot.slane %v943, %v947
      %v950 = vadd.f32 %v940, %v948
      %v951 = vxor.u32 %v950, 2147483648
      %v952 = vmul.f32 %v951, 1.442695
      %v953 = vpow.pop %v952
      %v954 = vadd.f32 %v953, 1.0
      %v955 = vrcp.pop %v954
      %v956 = vmul.f32 1.0, %v955
      %v957 = vtanh.pop %v950
      %959 = vrot.lane.b32.xlu0 %v789, 32
      %v960 = vpop.permute.xlu0 %959
      %v962 = vmul.f32 %v956, %v960
      %964 = vrot.lane.b32.xlu0 %v957, 64
      %v965 = vpop.permute.xlu0 %964
      %v967 = vmul.f32 %v956, %v965
      %969 = vrot.lane.b32.xlu0 %v967, 32
      %v970 = vpop.permute.xlu0 %969
      %v972 = vadd.f32 %v962, %v970
      %v973 = vtanh.pop %v972
      %975 = vrot.lane.b32.xlu0 %v973, 64
      %v976 = vpop.permute.xlu0 %975
      %v978 = vmul.f32 %v956, %v976
      %980 = vrot.lane.b32.xlu0 %v978, 32
      %v981 = vpop.permute.xlu0 %980
      %983 = vst.msk [vmem:[%s464] sm:$0xff] %vm351, %v981
      %985 = vrot.lane.b32.xlu0 %v972, 96
      %v986 = vpop.permute.xlu0 %985
      %988 = vst.msk [vmem:[%s466] sm:$0xff] %vm351, %v986
      %s989 = scalar_lea.vmem %s329, 8
      %990 = vst.msk [vmem:[%s989] sm:$0xff] %vm351, %v981
      %v991 = vld [vmem:[#allocation2] sm:$0xff]
      %v992 = vld [vmem:[#allocation3] sm:$0xff]
      %s993 = scalar_lea.vmem %s323, 16
      %v994 = vld [vmem:[%s993] sm:$0xff]
      %v995 = vld [vmem:[%s3] sm:$0xff]
      %v996 = vld [vmem:[%s3 + $0x8] sm:$0xff]
      %v997 = vld [vmem:[%s3 + $0x10] sm:$0xff]
      %v998 = vld [vmem:[%s3 + $0x18] sm:$0xff]
      %v1000 = vsel %vm351, %v991, 0
      %1002 = vmatprep.subr.mxu0 0.0
      %1003 = vmatpush1.msra.mxu0 %v995
      %1004 = vmatprep.subr.mxu0 0.0
      %1005 = vmatpush1.msra.mxu0 %v996
      %1006 = vmatprep.subr.mxu0 0.0
      %1007 = vmatpush1.msra.mxu0 %v997
      %1008 = vmatprep.subr.mxu0 0.0
      %1009 = vmatpush1.msra.mxu0 %v998
      %1010 = vmatprep.subr.mxu0 0.0
      %1011 = vmatpush1.msra.mxu0 0.0
      %1012 = vmatprep.subr.mxu0 0.0
      %1013 = vmatpush1.msra.mxu0 0.0
      %1014 = vmatprep.subr.mxu0 0.0
      %1015 = vmatpush1.msra.mxu0 0.0
      %1016 = vmatprep.subr.mxu0 0.0
      %1017 = vmatpush1.msra.mxu0 0.0
      %1018 = vmatprep.subr.mxu0 0.0
      %1019 = vmatpush1.msra.mxu0 0.0
      %1020 = vmatprep.subr.mxu0 0.0
      %1021 = vmatpush1.msra.mxu0 0.0
      %1022 = vmatprep.subr.mxu0 0.0
      %1023 = vmatpush1.msra.mxu0 0.0
      %1024 = vmatprep.subr.mxu0 0.0
      %1025 = vmatpush1.msra.mxu0 0.0
      %1026 = vmatprep.subr.mxu0 0.0
      %1027 = vmatpush1.msra.mxu0 0.0
      %1028 = vmatprep.subr.mxu0 0.0
      %1029 = vmatpush1.msra.mxu0 0.0
      %1030 = vmatprep.subr.mxu0 0.0
      %1031 = vmatpush1.msra.mxu0 0.0
      %1032 = vmatprep.subr.mxu0 0.0
      %1033 = vmatpush1.msra.mxu0 0.0
      %1034 = vmatprep.subr.mxu0 0.0
      %1035 = vmatpush1.msra.mxu0 0.0
      %1036 = vmatprep.subr.mxu0 0.0
      %1037 = vmatpush1.msra.mxu0 0.0
      %1038 = vmatprep.subr.mxu0 0.0
      %1039 = vmatpush1.msra.mxu0 0.0
      %1040 = vmatprep.subr.mxu0 0.0
      %1041 = vmatpush1.msra.mxu0 0.0
      %1042 = vmatprep.subr.mxu0 0.0
      %1043 = vmatpush1.msra.mxu0 0.0
      %1044 = vmatprep.subr.mxu0 0.0
      %1045 = vmatpush1.msra.mxu0 0.0
      %1046 = vmatprep.subr.mxu0 0.0
      %1047 = vmatpush1.msra.mxu0 0.0
      %1048 = vmatprep.subr.mxu0 0.0
      %1049 = vmatpush1.msra.mxu0 0.0
      %1050 = vmatprep.subr.mxu0 0.0
      %1051 = vmatpush1.msra.mxu0 0.0
      %1052 = vmatprep.subr.mxu0 0.0
      %1053 = vmatpush1.msra.mxu0 0.0
      %1054 = vmatprep.subr.mxu0 0.0
      %1055 = vmatpush1.msra.mxu0 0.0
      %1056 = vmatprep.subr.mxu0 0.0
      %1057 = vmatpush1.msra.mxu0 0.0
      %1058 = vmatprep.subr.mxu0 0.0
      %1059 = vmatpush1.msra.mxu0 0.0
      %1060 = vmatprep.subr.mxu0 0.0
      %1061 = vmatpush1.msra.mxu0 0.0
      %1062 = vmatprep.subr.mxu0 0.0
      %1063 = vmatpush1.msra.mxu0 0.0
      %1064 = vmatprep.subr.mxu0 0.0
      %1065 = vmatpush1.msra.mxu0 0.0
      %1066 = vmatprep.mubr.f32.mxu0 0.0
      %1067 = vmatmul.mubr.f32.gmra.mrb[0].mxu0 %v1000
      %v1068 = vpop.f32.mrb[0].mxu0
      %v1069 = vadd.f32 0.0, %v1068
      %v1070 = vpop.f32.mrb[0].mxu0
      %1071 = vdwg.mxu0
      %v1072 = vadd.f32 %v994, %v1069
      %v1073 = vxor.u32 %v1072, 2147483648
      %v1074 = vmul.f32 %v1073, 1.442695
      %v1075 = vpow.pop %v1074
      %v1076 = vadd.f32 %v1075, 1.0
      %v1077 = vrcp.pop %v1076
      %v1078 = vmul.f32 1.0, %v1077
      %v1079 = vtanh.pop %v1072
      %1081 = vrot.lane.b32.xlu0 %v992, 32
      %v1082 = vpop.permute.xlu0 %1081
      %v1084 = vmul.f32 %v1078, %v1082
      %1086 = vrot.lane.b32.xlu0 %v1079, 64
      %v1087 = vpop.permute.xlu0 %1086
      %v1089 = vmul.f32 %v1078, %v1087
      %1091 = vrot.lane.b32.xlu0 %v1089, 32
      %v1092 = vpop.permute.xlu0 %1091
      %v1094 = vadd.f32 %v1084, %v1092
      %v1095 = vtanh.pop %v1094
      %1097 = vrot.lane.b32.xlu0 %v1095, 64
      %v1098 = vpop.permute.xlu0 %1097
      %v1100 = vmul.f32 %v1078, %v1098
      %1102 = vrot.lane.b32.xlu0 %v1100, 32
      %v1103 = vpop.permute.xlu0 %1102
      %1105 = vst.msk [vmem:[#allocation2] sm:$0xff] %vm351, %v1103
      %1107 = vrot.lane.b32.xlu0 %v1094, 96
      %v1108 = vpop.permute.xlu0 %1107
      %1110 = vst.msk [vmem:[#allocation3] sm:$0xff] %vm351, %v1108
      %v1111 = vld [vmem:[%s464] sm:$0xff]
      %v1112 = vld [vmem:[%s466] sm:$0xff]
      %v1113 = vld [vmem:[%s4] sm:$0xff]
      %v1114 = vld [vmem:[%s4 + $0x8] sm:$0xff]
      %v1115 = vld [vmem:[%s4 + $0x10] sm:$0xff]
      %v1116 = vld [vmem:[%s4 + $0x18] sm:$0xff]
      %v1117 = vld [vmem:[%s5] sm:$0xff]
      %v1118 = vld [vmem:[%s5 + $0x8] sm:$0xff]
      %v1119 = vld [vmem:[%s5 + $0x10] sm:$0xff]
      %v1120 = vld [vmem:[%s5 + $0x18] sm:$0xff]
      %v1122 = vsel %vm351, %v1111, 0
      %1124 = vmatprep.subr.mxu0 0.0
      %1125 = vmatpush1.msra.mxu0 %v1117
      %1126 = vmatprep.subr.mxu0 0.0
      %1127 = vmatpush1.msra.mxu0 %v1118
      %1128 = vmatprep.subr.mxu0 0.0
      %1129 = vmatpush1.msra.mxu0 %v1119
      %1130 = vmatprep.subr.mxu0 0.0
      %1131 = vmatpush1.msra.mxu0 %v1120
      %1132 = vmatprep.subr.mxu0 0.0
      %1133 = vmatpush1.msra.mxu0 0.0
      %1134 = vmatprep.subr.mxu0 0.0
      %1135 = vmatpush1.msra.mxu0 0.0
      %1136 = vmatprep.subr.mxu0 0.0
      %1137 = vmatpush1.msra.mxu0 0.0
      %1138 = vmatprep.subr.mxu0 0.0
      %1139 = vmatpush1.msra.mxu0 0.0
      %1140 = vmatprep.subr.mxu0 0.0
      %1141 = vmatpush1.msra.mxu0 0.0
      %1142 = vmatprep.subr.mxu0 0.0
      %1143 = vmatpush1.msra.mxu0 0.0
      %1144 = vmatprep.subr.mxu0 0.0
      %1145 = vmatpush1.msra.mxu0 0.0
      %1146 = vmatprep.subr.mxu0 0.0
      %1147 = vmatpush1.msra.mxu0 0.0
      %1148 = vmatprep.subr.mxu0 0.0
      %1149 = vmatpush1.msra.mxu0 0.0
      %1150 = vmatprep.subr.mxu0 0.0
      %1151 = vmatpush1.msra.mxu0 0.0
      %1152 = vmatprep.subr.mxu0 0.0
      %1153 = vmatpush1.msra.mxu0 0.0
      %1154 = vmatprep.subr.mxu0 0.0
      %1155 = vmatpush1.msra.mxu0 0.0
      %1156 = vmatprep.subr.mxu0 0.0
      %1157 = vmatpush1.msra.mxu0 0.0
      %1158 = vmatprep.subr.mxu0 0.0
      %1159 = vmatpush1.msra.mxu0 0.0
      %1160 = vmatprep.subr.mxu0 0.0
      %1161 = vmatpush1.msra.mxu0 0.0
      %1162 = vmatprep.subr.mxu0 0.0
      %1163 = vmatpush1.msra.mxu0 0.0
      %1164 = vmatprep.subr.mxu0 0.0
      %1165 = vmatpush1.msra.mxu0 0.0
      %1166 = vmatprep.subr.mxu0 0.0
      %1167 = vmatpush1.msra.mxu0 0.0
      %1168 = vmatprep.subr.mxu0 0.0
      %1169 = vmatpush1.msra.mxu0 0.0
      %1170 = vmatprep.subr.mxu0 0.0
      %1171 = vmatpush1.msra.mxu0 0.0
      %1172 = vmatprep.subr.mxu0 0.0
      %1173 = vmatpush1.msra.mxu0 0.0
      %1174 = vmatprep.subr.mxu0 0.0
      %1175 = vmatpush1.msra.mxu0 0.0
      %1176 = vmatprep.subr.mxu0 0.0
      %1177 = vmatpush1.msra.mxu0 0.0
      %1178 = vmatprep.subr.mxu0 0.0
      %1179 = vmatpush1.msra.mxu0 0.0
      %1180 = vmatprep.subr.mxu0 0.0
      %1181 = vmatpush1.msra.mxu0 0.0
      %1182 = vmatprep.subr.mxu0 0.0
      %1183 = vmatpush1.msra.mxu0 0.0
      %1184 = vmatprep.subr.mxu0 0.0
      %1185 = vmatpush1.msra.mxu0 0.0
      %1186 = vmatprep.subr.mxu0 0.0
      %1187 = vmatpush1.msra.mxu0 0.0
      %1188 = vmatprep.mubr.f32.mxu0 0.0
      %1189 = vmatmul.mubr.f32.gmra.mrb[0].mxu0 %v1122
      %v1190 = vpop.f32.mrb[0].mxu0
      %v1191 = vadd.f32 0.0, %v1190
      %v1192 = vpop.f32.mrb[0].mxu0
      %1193 = vdwg.mxu0
      %v1194 = vsel %vm351, %v1103, 0
      %1196 = vmatprep.subr.mxu0 0.0
      %1197 = vmatpush1.msra.mxu0 %v1113
      %1198 = vmatprep.subr.mxu0 0.0
      %1199 = vmatpush1.msra.mxu0 %v1114
      %1200 = vmatprep.subr.mxu0 0.0
      %1201 = vmatpush1.msra.mxu0 %v1115
      %1202 = vmatprep.subr.mxu0 0.0
      %1203 = vmatpush1.msra.mxu0 %v1116
      %1204 = vmatprep.subr.mxu0 0.0
      %1205 = vmatpush1.msra.mxu0 0.0
      %1206 = vmatprep.subr.mxu0 0.0
      %1207 = vmatpush1.msra.mxu0 0.0
      %1208 = vmatprep.subr.mxu0 0.0
      %1209 = vmatpush1.msra.mxu0 0.0
      %1210 = vmatprep.subr.mxu0 0.0
      %1211 = vmatpush1.msra.mxu0 0.0
      %1212 = vmatprep.subr.mxu0 0.0
      %1213 = vmatpush1.msra.mxu0 0.0
      %1214 = vmatprep.subr.mxu0 0.0
      %1215 = vmatpush1.msra.mxu0 0.0
      %1216 = vmatprep.subr.mxu0 0.0
      %1217 = vmatpush1.msra.mxu0 0.0
      %1218 = vmatprep.subr.mxu0 0.0
      %1219 = vmatpush1.msra.mxu0 0.0
      %1220 = vmatprep.subr.mxu0 0.0
      %1221 = vmatpush1.msra.mxu0 0.0
      %1222 = vmatprep.subr.mxu0 0.0
      %1223 = vmatpush1.msra.mxu0 0.0
      %1224 = vmatprep.subr.mxu0 0.0
      %1225 = vmatpush1.msra.mxu0 0.0
      %1226 = vmatprep.subr.mxu0 0.0
      %1227 = vmatpush1.msra.mxu0 0.0
      %1228 = vmatprep.subr.mxu0 0.0
      %1229 = vmatpush1.msra.mxu0 0.0
      %1230 = vmatprep.subr.mxu0 0.0
      %1231 = vmatpush1.msra.mxu0 0.0
      %1232 = vmatprep.subr.mxu0 0.0
      %1233 = vmatpush1.msra.mxu0 0.0
      %1234 = vmatprep.subr.mxu0 0.0
      %1235 = vmatpush1.msra.mxu0 0.0
      %1236 = vmatprep.subr.mxu0 0.0
      %1237 = vmatpush1.msra.mxu0 0.0
      %1238 = vmatprep.subr.mxu0 0.0
      %1239 = vmatpush1.msra.mxu0 0.0
      %1240 = vmatprep.subr.mxu0 0.0
      %1241 = vmatpush1.msra.mxu0 0.0
      %1242 = vmatprep.subr.mxu0 0.0
      %1243 = vmatpush1.msra.mxu0 0.0
      %1244 = vmatprep.subr.mxu0 0.0
      %1245 = vmatpush1.msra.mxu0 0.0
      %1246 = vmatprep.subr.mxu0 0.0
      %1247 = vmatpush1.msra.mxu0 0.0
      %1248 = vmatprep.subr.mxu0 0.0
      %1249 = vmatpush1.msra.mxu0 0.0
      %1250 = vmatprep.subr.mxu0 0.0
      %1251 = vmatpush1.msra.mxu0 0.0
      %1252 = vmatprep.subr.mxu0 0.0
      %1253 = vmatpush1.msra.mxu0 0.0
      %1254 = vmatprep.subr.mxu0 0.0
      %1255 = vmatpush1.msra.mxu0 0.0
      %1256 = vmatprep.subr.mxu0 0.0
      %1257 = vmatpush1.msra.mxu0 0.0
      %1258 = vmatprep.subr.mxu0 0.0
      %1259 = vmatpush1.msra.mxu0 0.0
      %1260 = vmatprep.mubr.f32.mxu0 0.0
      %1261 = vmatmul.mubr.f32.gmra.mrb[0].mxu0 %v1194
      %v1262 = vpop.f32.mrb[0].mxu0
      %v1263 = vadd.f32 %v1191, %v1262
      %v1264 = vpop.f32.mrb[0].mxu0
      %1265 = vdwg.mxu0
      %v1266 = vld [vmem:[%s6] sm:$0x1]
      %v1268 = vlaneseq
      %v1269 = vshrl.u32 %v1268, 7
      %v1270 = vsub.s32 0, %v1269
      %v1271 = vrot.slane %v1266, %v1270
      %v1273 = vadd.f32 %v1263, %v1271
      %v1274 = vxor.u32 %v1273, 2147483648
      %v1275 = vmul.f32 %v1274, 1.442695
      %v1276 = vpow.pop %v1275
      %v1277 = vadd.f32 %v1276, 1.0
      %v1278 = vrcp.pop %v1277
      %v1279 = vmul.f32 1.0, %v1278
      %v1280 = vtanh.pop %v1273
      %1282 = vrot.lane.b32.xlu0 %v1112, 32
      %v1283 = vpop.permute.xlu0 %1282
      %v1285 = vmul.f32 %v1279, %v1283
      %1287 = vrot.lane.b32.xlu0 %v1280, 64
      %v1288 = vpop.permute.xlu0 %1287
      %v1290 = vmul.f32 %v1279, %v1288
      %1292 = vrot.lane.b32.xlu0 %v1290, 32
      %v1293 = vpop.permute.xlu0 %1292
      %v1295 = vadd.f32 %v1285, %v1293
      %v1296 = vtanh.pop %v1295
      %1298 = vrot.lane.b32.xlu0 %v1296, 64
      %v1299 = vpop.permute.xlu0 %1298
      %v1301 = vmul.f32 %v1279, %v1299
      %1303 = vrot.lane.b32.xlu0 %v1301, 32
      %v1304 = vpop.permute.xlu0 %1303
      %1306 = vst.msk [vmem:[%s464] sm:$0xff] %vm351, %v1304
      %1308 = vrot.lane.b32.xlu0 %v1295, 96
      %v1309 = vpop.permute.xlu0 %1308
      %1311 = vst.msk [vmem:[%s466] sm:$0xff] %vm351, %v1309
      %s1312 = scalar_lea.vmem %s329, 16
      %1313 = vst.msk [vmem:[%s1312] sm:$0xff] %vm351, %v1304
      %v1314 = vld [vmem:[#allocation2] sm:$0xff]
      %v1315 = vld [vmem:[#allocation3] sm:$0xff]
      %s1316 = scalar_lea.vmem %s323, 24
      %v1317 = vld [vmem:[%s1316] sm:$0xff]
      %v1318 = vld [vmem:[%s3] sm:$0xff]
      %v1319 = vld [vmem:[%s3 + $0x8] sm:$0xff]
      %v1320 = vld [vmem:[%s3 + $0x10] sm:$0xff]
      %v1321 = vld [vmem:[%s3 + $0x18] sm:$0xff]
      %v1323 = vsel %vm351, %v1314, 0
      %1325 = vmatprep.subr.mxu0 0.0
      %1326 = vmatpush1.msra.mxu0 %v1318
      %1327 = vmatprep.subr.mxu0 0.0
      %1328 = vmatpush1.msra.mxu0 %v1319
      %1329 = vmatprep.subr.mxu0 0.0
      %1330 = vmatpush1.msra.mxu0 %v1320
      %1331 = vmatprep.subr.mxu0 0.0
      %1332 = vmatpush1.msra.mxu0 %v1321
      %1333 = vmatprep.subr.mxu0 0.0
      %1334 = vmatpush1.msra.mxu0 0.0
      %1335 = vmatprep.subr.mxu0 0.0
      %1336 = vmatpush1.msra.mxu0 0.0
      %1337 = vmatprep.subr.mxu0 0.0
      %1338 = vmatpush1.msra.mxu0 0.0
      %1339 = vmatprep.subr.mxu0 0.0
      %1340 = vmatpush1.msra.mxu0 0.0
      %1341 = vmatprep.subr.mxu0 0.0
      %1342 = vmatpush1.msra.mxu0 0.0
      %1343 = vmatprep.subr.mxu0 0.0
      %1344 = vmatpush1.msra.mxu0 0.0
      %1345 = vmatprep.subr.mxu0 0.0
      %1346 = vmatpush1.msra.mxu0 0.0
      %1347 = vmatprep.subr.mxu0 0.0
      %1348 = vmatpush1.msra.mxu0 0.0
      %1349 = vmatprep.subr.mxu0 0.0
      %1350 = vmatpush1.msra.mxu0 0.0
      %1351 = vmatprep.subr.mxu0 0.0
      %1352 = vmatpush1.msra.mxu0 0.0
      %1353 = vmatprep.subr.mxu0 0.0
      %1354 = vmatpush1.msra.mxu0 0.0
      %1355 = vmatprep.subr.mxu0 0.0
      %1356 = vmatpush1.msra.mxu0 0.0
      %1357 = vmatprep.subr.mxu0 0.0
      %1358 = vmatpush1.msra.mxu0 0.0
      %1359 = vmatprep.subr.mxu0 0.0
      %1360 = vmatpush1.msra.mxu0 0.0
      %1361 = vmatprep.subr.mxu0 0.0
      %1362 = vmatpush1.msra.mxu0 0.0
      %1363 = vmatprep.subr.mxu0 0.0
      %1364 = vmatpush1.msra.mxu0 0.0
      %1365 = vmatprep.subr.mxu0 0.0
      %1366 = vmatpush1.msra.mxu0 0.0
      %1367 = vmatprep.subr.mxu0 0.0
      %1368 = vmatpush1.msra.mxu0 0.0
      %1369 = vmatprep.subr.mxu0 0.0
      %1370 = vmatpush1.msra.mxu0 0.0
      %1371 = vmatprep.subr.mxu0 0.0
      %1372 = vmatpush1.msra.mxu0 0.0
      %1373 = vmatprep.subr.mxu0 0.0
      %1374 = vmatpush1.msra.mxu0 0.0
      %1375 = vmatprep.subr.mxu0 0.0
      %1376 = vmatpush1.msra.mxu0 0.0
      %1377 = vmatprep.subr.mxu0 0.0
      %1378 = vmatpush1.msra.mxu0 0.0
      %1379 = vmatprep.subr.mxu0 0.0
      %1380 = vmatpush1.msra.mxu0 0.0
      %1381 = vmatprep.subr.mxu0 0.0
      %1382 = vmatpush1.msra.mxu0 0.0
      %1383 = vmatprep.subr.mxu0 0.0
      %1384 = vmatpush1.msra.mxu0 0.0
      %1385 = vmatprep.subr.mxu0 0.0
      %1386 = vmatpush1.msra.mxu0 0.0
      %1387 = vmatprep.subr.mxu0 0.0
      %1388 = vmatpush1.msra.mxu0 0.0
      %1389 = vmatprep.mubr.f32.mxu0 0.0
      %1390 = vmatmul.mubr.f32.gmra.mrb[0].mxu0 %v1323
      %v1391 = vpop.f32.mrb[0].mxu0
      %v1392 = vadd.f32 0.0, %v1391
      %v1393 = vpop.f32.mrb[0].mxu0
      %1394 = vdwg.mxu0
      %v1395 = vadd.f32 %v1317, %v1392
      %v1396 = vxor.u32 %v1395, 2147483648
      %v1397 = vmul.f32 %v1396, 1.442695
      %v1398 = vpow.pop %v1397
      %v1399 = vadd.f32 %v1398, 1.0
      %v1400 = vrcp.pop %v1399
      %v1401 = vmul.f32 1.0, %v1400
      %v1402 = vtanh.pop %v1395
      %1404 = vrot.lane.b32.xlu0 %v1315, 32
      %v1405 = vpop.permute.xlu0 %1404
      %v1407 = vmul.f32 %v1401, %v1405
      %1409 = vrot.lane.b32.xlu0 %v1402, 64
      %v1410 = vpop.permute.xlu0 %1409
      %v1412 = vmul.f32 %v1401, %v1410
      %1414 = vrot.lane.b32.xlu0 %v1412, 32
      %v1415 = vpop.permute.xlu0 %1414
      %v1417 = vadd.f32 %v1407, %v1415
      %v1418 = vtanh.pop %v1417
      %1420 = vrot.lane.b32.xlu0 %v1418, 64
      %v1421 = vpop.permute.xlu0 %1420
      %v1423 = vmul.f32 %v1401, %v1421
      %1425 = vrot.lane.b32.xlu0 %v1423, 32
      %v1426 = vpop.permute.xlu0 %1425
      %1428 = vst.msk [vmem:[#allocation2] sm:$0xff] %vm351, %v1426
      %1430 = vrot.lane.b32.xlu0 %v1417, 96
      %v1431 = vpop.permute.xlu0 %1430
      %1433 = vst.msk [vmem:[#allocation3] sm:$0xff] %vm351, %v1431
      %v1434 = vld [vmem:[%s464] sm:$0xff]
      %v1435 = vld [vmem:[%s466] sm:$0xff]
      %v1436 = vld [vmem:[%s4] sm:$0xff]
      %v1437 = vld [vmem:[%s4 + $0x8] sm:$0xff]
      %v1438 = vld [vmem:[%s4 + $0x10] sm:$0xff]
      %v1439 = vld [vmem:[%s4 + $0x18] sm:$0xff]
      %v1440 = vld [vmem:[%s5] sm:$0xff]
      %v1441 = vld [vmem:[%s5 + $0x8] sm:$0xff]
      %v1442 = vld [vmem:[%s5 + $0x10] sm:$0xff]
      %v1443 = vld [vmem:[%s5 + $0x18] sm:$0xff]
      %v1445 = vsel %vm351, %v1434, 0
      %1447 = vmatprep.subr.mxu0 0.0
      %1448 = vmatpush1.msra.mxu0 %v1440
      %1449 = vmatprep.subr.mxu0 0.0
      %1450 = vmatpush1.msra.mxu0 %v1441
      %1451 = vmatprep.subr.mxu0 0.0
      %1452 = vmatpush1.msra.mxu0 %v1442
      %1453 = vmatprep.subr.mxu0 0.0
      %1454 = vmatpush1.msra.mxu0 %v1443
      %1455 = vmatprep.subr.mxu0 0.0
      %1456 = vmatpush1.msra.mxu0 0.0
      %1457 = vmatprep.subr.mxu0 0.0
      %1458 = vmatpush1.msra.mxu0 0.0
      %1459 = vmatprep.subr.mxu0 0.0
      %1460 = vmatpush1.msra.mxu0 0.0
      %1461 = vmatprep.subr.mxu0 0.0
      %1462 = vmatpush1.msra.mxu0 0.0
      %1463 = vmatprep.subr.mxu0 0.0
      %1464 = vmatpush1.msra.mxu0 0.0
      %1465 = vmatprep.subr.mxu0 0.0
      %1466 = vmatpush1.msra.mxu0 0.0
      %1467 = vmatprep.subr.mxu0 0.0
      %1468 = vmatpush1.msra.mxu0 0.0
      %1469 = vmatprep.subr.mxu0 0.0
      %1470 = vmatpush1.msra.mxu0 0.0
      %1471 = vmatprep.subr.mxu0 0.0
      %1472 = vmatpush1.msra.mxu0 0.0
      %1473 = vmatprep.subr.mxu0 0.0
      %1474 = vmatpush1.msra.mxu0 0.0
      %1475 = vmatprep.subr.mxu0 0.0
      %1476 = vmatpush1.msra.mxu0 0.0
      %1477 = vmatprep.subr.mxu0 0.0
      %1478 = vmatpush1.msra.mxu0 0.0
      %1479 = vmatprep.subr.mxu0 0.0
      %1480 = vmatpush1.msra.mxu0 0.0
      %1481 = vmatprep.subr.mxu0 0.0
      %1482 = vmatpush1.msra.mxu0 0.0
      %1483 = vmatprep.subr.mxu0 0.0
      %1484 = vmatpush1.msra.mxu0 0.0
      %1485 = vmatprep.subr.mxu0 0.0
      %1486 = vmatpush1.msra.mxu0 0.0
      %1487 = vmatprep.subr.mxu0 0.0
      %1488 = vmatpush1.msra.mxu0 0.0
      %1489 = vmatprep.subr.mxu0 0.0
      %1490 = vmatpush1.msra.mxu0 0.0
      %1491 = vmatprep.subr.mxu0 0.0
      %1492 = vmatpush1.msra.mxu0 0.0
      %1493 = vmatprep.subr.mxu0 0.0
      %1494 = vmatpush1.msra.mxu0 0.0
      %1495 = vmatprep.subr.mxu0 0.0
      %1496 = vmatpush1.msra.mxu0 0.0
      %1497 = vmatprep.subr.mxu0 0.0
      %1498 = vmatpush1.msra.mxu0 0.0
      %1499 = vmatprep.subr.mxu0 0.0
      %1500 = vmatpush1.msra.mxu0 0.0
      %1501 = vmatprep.subr.mxu0 0.0
      %1502 = vmatpush1.msra.mxu0 0.0
      %1503 = vmatprep.subr.mxu0 0.0
      %1504 = vmatpush1.msra.mxu0 0.0
      %1505 = vmatprep.subr.mxu0 0.0
      %1506 = vmatpush1.msra.mxu0 0.0
      %1507 = vmatprep.subr.mxu0 0.0
      %1508 = vmatpush1.msra.mxu0 0.0
      %1509 = vmatprep.subr.mxu0 0.0
      %1510 = vmatpush1.msra.mxu0 0.0
      %1511 = vmatprep.mubr.f32.mxu0 0.0
      %1512 = vmatmul.mubr.f32.gmra.mrb[0].mxu0 %v1445
      %v1513 = vpop.f32.mrb[0].mxu0
      %v1514 = vadd.f32 0.0, %v1513
      %v1515 = vpop.f32.mrb[0].mxu0
      %1516 = vdwg.mxu0
      %v1517 = vsel %vm351, %v1426, 0
      %1519 = vmatprep.subr.mxu0 0.0
      %1520 = vmatpush1.msra.mxu0 %v1436
      %1521 = vmatprep.subr.mxu0 0.0
      %1522 = vmatpush1.msra.mxu0 %v1437
      %1523 = vmatprep.subr.mxu0 0.0
      %1524 = vmatpush1.msra.mxu0 %v1438
      %1525 = vmatprep.subr.mxu0 0.0
      %1526 = vmatpush1.msra.mxu0 %v1439
      %1527 = vmatprep.subr.mxu0 0.0
      %1528 = vmatpush1.msra.mxu0 0.0
      %1529 = vmatprep.subr.mxu0 0.0
      %1530 = vmatpush1.msra.mxu0 0.0
      %1531 = vmatprep.subr.mxu0 0.0
      %1532 = vmatpush1.msra.mxu0 0.0
      %1533 = vmatprep.subr.mxu0 0.0
      %1534 = vmatpush1.msra.mxu0 0.0
      %1535 = vmatprep.subr.mxu0 0.0
      %1536 = vmatpush1.msra.mxu0 0.0
      %1537 = vmatprep.subr.mxu0 0.0
      %1538 = vmatpush1.msra.mxu0 0.0
      %1539 = vmatprep.subr.mxu0 0.0
      %1540 = vmatpush1.msra.mxu0 0.0
      %1541 = vmatprep.subr.mxu0 0.0
      %1542 = vmatpush1.msra.mxu0 0.0
      %1543 = vmatprep.subr.mxu0 0.0
      %1544 = vmatpush1.msra.mxu0 0.0
      %1545 = vmatprep.subr.mxu0 0.0
      %1546 = vmatpush1.msra.mxu0 0.0
      %1547 = vmatprep.subr.mxu0 0.0
      %1548 = vmatpush1.msra.mxu0 0.0
      %1549 = vmatprep.subr.mxu0 0.0
      %1550 = vmatpush1.msra.mxu0 0.0
      %1551 = vmatprep.subr.mxu0 0.0
      %1552 = vmatpush1.msra.mxu0 0.0
      %1553 = vmatprep.subr.mxu0 0.0
      %1554 = vmatpush1.msra.mxu0 0.0
      %1555 = vmatprep.subr.mxu0 0.0
      %1556 = vmatpush1.msra.mxu0 0.0
      %1557 = vmatprep.subr.mxu0 0.0
      %1558 = vmatpush1.msra.mxu0 0.0
      %1559 = vmatprep.subr.mxu0 0.0
      %1560 = vmatpush1.msra.mxu0 0.0
      %1561 = vmatprep.subr.mxu0 0.0
      %1562 = vmatpush1.msra.mxu0 0.0
      %1563 = vmatprep.subr.mxu0 0.0
      %1564 = vmatpush1.msra.mxu0 0.0
      %1565 = vmatprep.subr.mxu0 0.0
      %1566 = vmatpush1.msra.mxu0 0.0
      %1567 = vmatprep.subr.mxu0 0.0
      %1568 = vmatpush1.msra.mxu0 0.0
      %1569 = vmatprep.subr.mxu0 0.0
      %1570 = vmatpush1.msra.mxu0 0.0
      %1571 = vmatprep.subr.mxu0 0.0
      %1572 = vmatpush1.msra.mxu0 0.0
      %1573 = vmatprep.subr.mxu0 0.0
      %1574 = vmatpush1.msra.mxu0 0.0
      %1575 = vmatprep.subr.mxu0 0.0
      %1576 = vmatpush1.msra.mxu0 0.0
      %1577 = vmatprep.subr.mxu0 0.0
      %1578 = vmatpush1.msra.mxu0 0.0
      %1579 = vmatprep.subr.mxu0 0.0
      %1580 = vmatpush1.msra.mxu0 0.0
      %1581 = vmatprep.subr.mxu0 0.0
      %1582 = vmatpush1.msra.mxu0 0.0
      %1583 = vmatprep.mubr.f32.mxu0 0.0
      %1584 = vmatmul.mubr.f32.gmra.mrb[0].mxu0 %v1517
      %v1585 = vpop.f32.mrb[0].mxu0
      %v1586 = vadd.f32 %v1514, %v1585
      %v1587 = vpop.f32.mrb[0].mxu0
      %1588 = vdwg.mxu0
      %v1589 = vld [vmem:[%s6] sm:$0x1]
      %v1591 = vlaneseq
      %v1592 = vshrl.u32 %v1591, 7
      %v1593 = vsub.s32 0, %v1592
      %v1594 = vrot.slane %v1589, %v1593
      %v1596 = vadd.f32 %v1586, %v1594
      %v1597 = vxor.u32 %v1596, 2147483648
      %v1598 = vmul.f32 %v1597, 1.442695
      %v1599 = vpow.pop %v1598
      %v1600 = vadd.f32 %v1599, 1.0
      %v1601 = vrcp.pop %v1600
      %v1602 = vmul.f32 1.0, %v1601
      %v1603 = vtanh.pop %v1596
      %1605 = vrot.lane.b32.xlu0 %v1435, 32
      %v1606 = vpop.permute.xlu0 %1605
      %v1608 = vmul.f32 %v1602, %v1606
      %1610 = vrot.lane.b32.xlu0 %v1603, 64
      %v1611 = vpop.permute.xlu0 %1610
      %v1613 = vmul.f32 %v1602, %v1611
      %1615 = vrot.lane.b32.xlu0 %v1613, 32
      %v1616 = vpop.permute.xlu0 %1615
      %v1618 = vadd.f32 %v1608, %v1616
      %v1619 = vtanh.pop %v1618
      %1621 = vrot.lane.b32.xlu0 %v1619, 64
      %v1622 = vpop.permute.xlu0 %1621
      %v1624 = vmul.f32 %v1602, %v1622
      %1626 = vrot.lane.b32.xlu0 %v1624, 32
      %v1627 = vpop.permute.xlu0 %1626
      %1629 = vst.msk [vmem:[%s464] sm:$0xff] %vm351, %v1627
      %1631 = vrot.lane.b32.xlu0 %v1618, 96
      %v1632 = vpop.permute.xlu0 %1631
      %1634 = vst.msk [vmem:[%s466] sm:$0xff] %vm351, %v1632
      %s1635 = scalar_lea.vmem %s329, 24
      %1636 = vst.msk [vmem:[%s1635] sm:$0xff] %vm351, %v1627
      %p1637 = scmp.eq.s32.totalorder %s21, 1
      // Predicated region
      $region53: #{rnn_forward.1} parent=47 // pred_check
        %p1638 = pneg %p1637
      $region54: #{rnn_forward.1} parent=47 // pred_check_branch
        %1640 = sbr.rel (%p1638) target = $region56
      $region55: #{rnn_forward.1} parent=47 // pred_region
        %v1641 = vld [vmem:[#allocation2] sm:$0xff]
        %v1642 = vld [vmem:[#allocation2 + $0x8] sm:$0xff]
        %1643 = vst.msk [vmem:[%s8] sm:$0xff] %vm351, %v1641
        %1644 = vst.msk [vmem:[%s8 + $0x8] sm:$0xff] %vm351, %v1642
        %v1645 = vld [vmem:[#allocation3] sm:$0xff]
        %v1646 = vld [vmem:[#allocation3 + $0x8] sm:$0xff]
        %1647 = vst.msk [vmem:[%s9] sm:$0xff] %vm351, %v1645
        %1648 = vst.msk [vmem:[%s9 + $0x8] sm:$0xff] %vm351, %v1646
      $region56: #{rnn_forward.1} parent=47 // pred_fallthru
        _
      %s1649 = smul.u32 4, %s21
      %p1650 = scmp.lt.s32.totalorder %s1649, 7
      %s1651 = scalar_select %p1650, %s1649, 7
      %s1652 = smul.addr %s1651, 8
      %s1653 = scalar_lea.vmem %s7, %s1652
      // Predicated region
      $region57: #{rnn_forward.1} parent=47 // pred_check
        %p1654 = pneg %p191
      $region58: #{rnn_forward.1} parent=47 // pred_check_branch
        %1656 = sbr.rel (%p1654) target = $region60
      $region59: #{rnn_forward.1} parent=47 // pred_region
        %s1657 = smul.u32 4, %s21
      $region60: #{rnn_forward.1} parent=47 // pred_fallthru
        _
      // Predicated region
      $region61: #{rnn_forward.1} parent=47 // pred_check
        %p1658 = pneg %p212
      $region62: #{rnn_forward.1} parent=47 // pred_check_branch
        %1660 = sbr.rel (%p1658) target = $region64
      $region63: #{rnn_forward.1} parent=47 // pred_region
        _
      $region64: #{rnn_forward.1} parent=47 // pred_fallthru
        _
      // Predicated region
      $region65: #{rnn_forward.1} parent=47 // pred_check
        %p1661 = pneg %p233
      $region66: #{rnn_forward.1} parent=47 // pred_check_branch
        %1663 = sbr.rel (%p1661) target = $region68
      $region67: #{rnn_forward.1} parent=47 // pred_region
        _
      $region68: #{rnn_forward.1} parent=47 // pred_fallthru
        _
      // Predicated region
      $region69: #{rnn_forward.1} parent=47 // pred_check
        %p1664 = pneg %p212
      $region70: #{rnn_forward.1} parent=47 // pred_check_branch
        %1666 = sbr.rel (%p1664) target = $region72
      $region71: #{rnn_forward.1} parent=47 // pred_region
        _
      $region72: #{rnn_forward.1} parent=47 // pred_fallthru
        _
      // Predicated region
      $region73: #{rnn_forward.1} parent=47 // pred_check
        %p1667 = pneg %p233
      $region74: #{rnn_forward.1} parent=47 // pred_check_branch
        %1669 = sbr.rel (%p1667) target = $region76
      $region75: #{rnn_forward.1} parent=47 // pred_region
        _
      $region76: #{rnn_forward.1} parent=47 // pred_fallthru
        _
    $region48: #{rnn_forward.1} parent=5 // pred_fallthru
      _
    %p1670 = scmp.le.s32.totalorder 2, %s16
    // Predicated region
    $region77: #{rnn_forward.1} parent=5 // pred_check
      %p1671 = pneg %p1670
    $region78: #{rnn_forward.1} parent=5 // pred_check_branch
      %1673 = sbr.rel (%p1671) target = $region80
    $region79: #{rnn_forward.1} parent=5 // pred_region
      %s1674 = ssub.s32 %s16, 2
      // Predicated region
      $region81: #{rnn_forward.1} parent=79 // pred_check
        %p1675 = pneg %p197
      $region82: #{rnn_forward.1} parent=79 // pred_check_branch
        %1677 = sbr.rel (%p1675) target = $region84
      $region83: #{rnn_forward.1} parent=79 // pred_region
        %s1678 = smul.u32 4, %s22
        %p1679 = scmp.lt.s32.totalorder %s1678, 7
        %s1680 = scalar_select %p1679, %s1678, 7
        %s1681 = smul.addr %s1680, 8
        %s1682 = scalar_lea.vmem %s7, %s1681
      $region84: #{rnn_forward.1} parent=79 // pred_fallthru
        _
    $region80: #{rnn_forward.1} parent=5 // pred_fallthru
      _
  $region6: #{rnn_forward.1} parent=0 // loop_footer
    %s20 = sadd.s32 1, %s16
  $region7: #{rnn_forward.1} parent=0 // loop_footer_branch
    %15 = sbr.rel target = $region3
  $region8: #{rnn_forward.1} parent=0 // loop_exit
    _

</llo_original>
